<compile_context>
chip_gen: v7x
topology: tpu7x:2x2x1
jax: 0.10.0
libtpu: 0.0.40
codegen_flags: <defaults>
</compile_context>

<pallas_src>
import jax
import jax.numpy as jnp
from jax.experimental import pallas as pl
from jax.experimental.pallas import tpu as pltpu


def classifier_head_kernel(x_ref, labels_ref, valid_ref,
                           w1_ref, b1_ref, w2p_ref, b2p_ref, cw_ref,
                           logits_ref, ce_ref):
    # x_ref      : (TILE_B, H)  bf16   CLS-token features for this batch tile
    # labels_ref : (TILE_B, 1)  i32
    # valid_ref  : (TILE_B, 1)  f32    1.0 for real rows, 0.0 for batch padding
    # w1_ref     : (H, H)  bf16 , b1_ref : (1, H)  f32    SimpleClassifier.dense
    # w2p_ref    : (H, LP) bf16 , b2p_ref: (1, LP) f32    output layer, zero-padded to LP lanes
    # cw_ref     : (2,) f32 in SMEM                        class weights [7.0, 3.0]
    # logits_ref : (TILE_B, LP) f32    lane-dense logits output block
    # ce_ref     : (TILE_B, 2)  f32    [:, 0] = w_i * nll_i , [:, 1] = w_i

    # dropout (eval) -> identity
    h = jnp.dot(x_ref[...], w1_ref[...], preferred_element_type=jnp.float32)
    h = jnp.tanh(h + b1_ref[...])                       # f32 VPU / EUP math
    # dropout (eval) -> identity

    # Output layer on the MXU against the 128-wide zero-padded weight: the MXU
    # output tile is >=128 wide anyway, and it makes the logits store unmasked.
    logits = jnp.dot(h.astype(w2p_ref.dtype), w2p_ref[...],
                     preferred_element_type=jnp.float32) + b2p_ref[...]
    logits_ref[...] = logits                            # (TILE_B, 128) lane-dense store

    # Class-weighted cross-entropy, specialized for num_label == 2.
    l0 = logits[:, 0:1]
    l1 = logits[:, 1:2]
    m = jnp.maximum(l0, l1)
    lse = m + jnp.log(jnp.exp(l0 - m) + jnp.exp(l1 - m))     # (TILE_B, 1)

    lbl = labels_ref[...]
    picked = jnp.where(lbl == 0, l0, l1)
    # NOTE: any label != 0 is treated as class 1 (PyTorch CrossEntropyLoss
    # would raise on out-of-range labels); padded rows have valid == 0 so they
    # contribute 0 to both numerator and denominator.
    w = jnp.where(lbl == 0, cw_ref[0], cw_ref[1]) * valid_ref[...]
    nll = lse - picked

    ce_ref[...] = jnp.concatenate([w * nll, w], axis=-1)     # (TILE_B, 2)


def custom_classifier_forward(sequence_output, labels, params, *, tile_b=256):
    """SimpleClassifier head + class-weighted CE loss as one batch-gridded Pallas kernel."""
    B, _, H = sequence_output.shape
    L = params["w2"].shape[1]
    LP = 128                                   # lane-dense padded logits width

    # Glue: only the CLS row feeds the head -- slice before the kernel so the
    # (B, S, H) sequence tensor is never DMA'd into VMEM.
    x_cls = sequence_output[:, 0, :].astype(jnp.bfloat16)

    # Pad the batch to a multiple of tile_b (padded rows get valid = 0).
    tile_b = max(16, (tile_b // 16) * 16)      # bf16 sublane tile is (16, 128)
    n_tiles = pl.cdiv(B, tile_b)
    B_pad = n_tiles * tile_b
    pad = B_pad - B
    x_p = jnp.pad(x_cls, ((0, pad), (0, 0)))
    labels_p = jnp.pad(labels.astype(jnp.int32), (0, pad)).reshape(B_pad, 1)
    valid_p = jnp.pad(jnp.ones((B,), jnp.float32), (0, pad)).reshape(B_pad, 1)

    # bf16 matmul operands (f32 accumulation in-kernel), f32 biases.
    w1 = params["w1"].astype(jnp.bfloat16)
    b1 = params["b1"].astype(jnp.float32)
    w2p = jnp.pad(params["w2"], ((0, 0), (0, LP - L))).astype(jnp.bfloat16)
    b2p = jnp.pad(params["b2"], ((0, 0), (0, LP - L))).astype(jnp.float32)
    cw = params["class_weights"].reshape(L).astype(jnp.float32)

    inv = lambda i: (0, 0)                     # grid-invariant: weights stay VMEM-resident
    tiled = lambda i: (i, 0)                   # per-batch-tile blocks

    cost = pl.CostEstimate(
        flops=2 * B_pad * H * H + 2 * B_pad * H * LP,
        transcendentals=B_pad * H + 2 * B_pad,             # tanh + exp
        bytes_accessed=(2 * (B_pad * H + H * H + H * LP)
                        + 4 * (B_pad * LP + 2 * B_pad + 2 * B_pad)),
    )

    # NOTE: for very large hidden sizes (H >= 4096) on v7x (64 MiB VMEM), add a
    # K grid axis (last, "arbitrary") with tk ~ 512 and an f32 accumulator
    # scratch instead of keeping the whole w1 resident.
    logits_pad, ce_parts = pl.pallas_call(
        classifier_head_kernel,
        grid=(n_tiles,),
        in_specs=[
            pl.BlockSpec((tile_b, H), tiled),                    # x (CLS features, bf16)
            pl.BlockSpec((tile_b, 1), tiled),                    # labels
            pl.BlockSpec((tile_b, 1), tiled),                    # valid mask
            pl.BlockSpec((H, H), inv),                           # w1 (bf16, resident)
            pl.BlockSpec((1, H), inv),                           # b1
            pl.BlockSpec((H, LP), inv),                          # w2 padded (bf16, resident)
            pl.BlockSpec((1, LP), inv),                          # b2 padded
            pl.BlockSpec(memory_space=pltpu.MemorySpace.SMEM),   # class weights (scalars)
        ],
        out_specs=(
            pl.BlockSpec((tile_b, LP), tiled),                   # logits (lane-dense)
            pl.BlockSpec((tile_b, 2), tiled),                    # per-row CE partials
        ),
        out_shape=(
            jax.ShapeDtypeStruct((B_pad, LP), jnp.float32),
            jax.ShapeDtypeStruct((B_pad, 2), jnp.float32),
        ),
        compiler_params=pltpu.CompilerParams(
            dimension_semantics=("parallel",),   # no revisited blocks -> megacore-friendly
            vmem_limit_bytes=48 * 1024 * 1024,
        ),
        cost_estimate=cost,
    )(x_p, labels_p, valid_p, w1, b1, w2p, b2p, cw)

    # Wrapper-side reduction keeps the batch grid axis fully parallel.
    num = jnp.sum(ce_parts[:, 0])
    den = jnp.sum(ce_parts[:, 1])
    loss = num / den
    logits = logits_pad[:B, :L]
    return loss, logits


def synthetic_backbone(input_ids, attention_mask, emb_table):
    # Glue (plain JAX): deterministic stand-in for the pretrained transformer.
    seq = jnp.take(emb_table, input_ids, axis=0)                 # (B, S, H)
    seq = seq * attention_mask[..., None].astype(seq.dtype)      # respect the mask
    return seq


if __name__ == "__main__":
    B, S, H, L, VOCAB = 16, 8, 32, 2, 64   # num_label = 2 ('no', 'yes')

    key = jax.random.PRNGKey(0)
    k_emb, k_w1, k_b1, k_w2, k_b2, k_ids, k_lbl = jax.random.split(key, 7)

    params = {
        "w1": jax.random.normal(k_w1, (H, H), jnp.float32) * 0.05,
        "b1": jax.random.normal(k_b1, (1, H), jnp.float32) * 0.05,
        "w2": jax.random.normal(k_w2, (H, L), jnp.float32) * 0.05,
        "b2": jax.random.normal(k_b2, (1, L), jnp.float32) * 0.05,
        "class_weights": jnp.array([[7.0, 3.0]], dtype=jnp.float32),
    }
    emb_table = jax.random.normal(k_emb, (VOCAB, H), jnp.float32) * 0.1

    input_ids = jax.random.randint(k_ids, (B, S), 0, VOCAB, dtype=jnp.int32)
    attention_mask = jnp.ones((B, S), dtype=jnp.int32)
    labels = jax.random.randint(k_lbl, (B,), 0, L, dtype=jnp.int32)

    sequence_output = synthetic_backbone(input_ids, attention_mask, emb_table)

    loss, logits = custom_classifier_forward(sequence_output, labels, params)
    jax.block_until_ready((loss, logits))

    # Pure-JAX f32 reference of the head + weighted CE.  The kernel runs its
    # matmuls in bf16 (f32 accumulation), so the tolerance is loosened -- an
    # expected precision change, not a bug.
    x_ref = sequence_output[:, 0, :]
    h_ref = jnp.tanh(x_ref @ params["w1"] + params["b1"])
    logits_ref = h_ref @ params["w2"] + params["b2"]
    logp = jax.nn.log_softmax(logits_ref, axis=-1)
    nll = -jnp.take_along_axis(logp, labels[:, None], axis=-1)[:, 0]
    w = params["class_weights"][0][labels]
    loss_ref = jnp.sum(w * nll) / jnp.sum(w)

    assert jnp.allclose(logits, logits_ref, atol=1e-2, rtol=1e-2), (
        float(jnp.max(jnp.abs(logits - logits_ref))))
    assert jnp.allclose(loss, loss_ref, atol=1e-2, rtol=1e-2), (float(loss), float(loss_ref))
    print("KERNEL_OK")
</pallas_src>

<mosaic_0001>
module attributes {stable_mosaic.version = 11 : i64} {
  func.func @classifier_head_kernel(%arg0: i32, %arg1: memref<256x32xbf16, #tpu.memory_space<vmem>>, %arg2: memref<256x1xi32, #tpu.memory_space<vmem>>, %arg3: memref<256x1xf32, #tpu.memory_space<vmem>>, %arg4: memref<32x32xbf16, #tpu.memory_space<vmem>>, %arg5: memref<1x32xf32, #tpu.memory_space<vmem>>, %arg6: memref<32x128xbf16, #tpu.memory_space<vmem>>, %arg7: memref<1x128xf32, #tpu.memory_space<vmem>>, %arg8: memref<2xf32, #tpu.memory_space<smem>>, %arg9: memref<256x128xf32, #tpu.memory_space<vmem>>, %arg10: memref<256x2xf32, #tpu.memory_space<vmem>>) attributes {dimension_semantics = [#tpu.dimension_semantics<parallel>], iteration_bounds = array<i64: 1>, scalar_prefetch = 0 : i64, scratch_operands = 0 : i64, tpu.core_type = #tpu.core_type<tc>, window_params = [{transform_indices = @transform_0, window_bounds = array<i64: 256, 32>}, {transform_indices = @transform_1, window_bounds = array<i64: 256, 1>}, {transform_indices = @transform_2, window_bounds = array<i64: 256, 1>}, {pipeline_mode = #tpu.pipeline_mode<synchronous>, transform_indices = @transform_3, window_bounds = array<i64: 32, 32>}, {pipeline_mode = #tpu.pipeline_mode<synchronous>, transform_indices = @transform_4, window_bounds = array<i64: 1, 32>}, {pipeline_mode = #tpu.pipeline_mode<synchronous>, transform_indices = @transform_5, window_bounds = array<i64: 32, 128>}, {pipeline_mode = #tpu.pipeline_mode<synchronous>, transform_indices = @transform_6, window_bounds = array<i64: 1, 128>}, {transform_indices = @transform_7, window_bounds = array<i64: 2>}, {transform_indices = @transform_8, window_bounds = array<i64: 256, 128>}, {transform_indices = @transform_9, window_bounds = array<i64: 256, 2>}]} {
    %c0 = arith.constant 0 : index
    %c0_0 = arith.constant 0 : index
    %0 = vector.load %arg1[%c0, %c0_0] : memref<256x32xbf16, #tpu.memory_space<vmem>>, vector<256x32xbf16>
    %c0_1 = arith.constant 0 : index
    %c0_2 = arith.constant 0 : index
    %1 = vector.load %arg4[%c0_1, %c0_2] : memref<32x32xbf16, #tpu.memory_space<vmem>>, vector<32x32xbf16>
    %cst = arith.constant dense<0.000000e+00> : vector<256x32xf32>
    %2 = tpu.matmul %0, %1, %cst {dimension_numbers = #tpu.dot_dimension_numbers<[1], [0], [0], [1], [0, 0, 1, 1], [], []>} : vector<256x32xbf16>, vector<32x32xbf16>, vector<256x32xf32> -> vector<256x32xf32>
    %c0_3 = arith.constant 0 : index
    %c0_4 = arith.constant 0 : index
    %3 = vector.load %arg5[%c0_3, %c0_4] : memref<1x32xf32, #tpu.memory_space<vmem>>, vector<1x32xf32>
    %4 = vector.broadcast %3 : vector<1x32xf32> to vector<256x32xf32>
    %5 = arith.addf %2, %4 : vector<256x32xf32>
    %6 = math.tanh %5 : vector<256x32xf32>
    %7 = arith.truncf %6 : vector<256x32xf32> to vector<256x32xbf16>
    %c0_5 = arith.constant 0 : index
    %c0_6 = arith.constant 0 : index
    %8 = vector.load %arg6[%c0_5, %c0_6] : memref<32x128xbf16, #tpu.memory_space<vmem>>, vector<32x128xbf16>
    %cst_7 = arith.constant dense<0.000000e+00> : vector<256x128xf32>
    %9 = tpu.matmul %7, %8, %cst_7 {dimension_numbers = #tpu.dot_dimension_numbers<[1], [0], [0], [1], [0, 0, 1, 1], [], []>} : vector<256x32xbf16>, vector<32x128xbf16>, vector<256x128xf32> -> vector<256x128xf32>
    %c0_8 = arith.constant 0 : index
    %c0_9 = arith.constant 0 : index
    %10 = vector.load %arg7[%c0_8, %c0_9] : memref<1x128xf32, #tpu.memory_space<vmem>>, vector<1x128xf32>
    %11 = vector.broadcast %10 : vector<1x128xf32> to vector<256x128xf32>
    %12 = arith.addf %9, %11 : vector<256x128xf32>
    %c0_10 = arith.constant 0 : index
    %c0_11 = arith.constant 0 : index
    %13 = vector.load %arg9[%c0_10, %c0_11] : memref<256x128xf32, #tpu.memory_space<vmem>>, vector<256x128xf32>
    tpu.vector_store %arg9[%c0_10, %c0_11], %12 {strides = array<i32>} : memref<256x128xf32, #tpu.memory_space<vmem>>, vector<256x128xf32>,
    %14 = vector.extract_strided_slice %12 {offsets = [0, 0], sizes = [256, 1], strides = [1, 1]} : vector<256x128xf32> to vector<256x1xf32>
    %15 = vector.extract_strided_slice %12 {offsets = [0, 1], sizes = [256, 1], strides = [1, 1]} : vector<256x128xf32> to vector<256x1xf32>
    %16 = arith.maximumf %14, %15 : vector<256x1xf32>
    %17 = arith.subf %14, %16 : vector<256x1xf32>
    %18 = math.exp %17 : vector<256x1xf32>
    %19 = arith.subf %15, %16 : vector<256x1xf32>
    %20 = math.exp %19 : vector<256x1xf32>
    %21 = arith.addf %18, %20 : vector<256x1xf32>
    %22 = math.log %21 : vector<256x1xf32>
    %23 = arith.addf %16, %22 : vector<256x1xf32>
    %c0_12 = arith.constant 0 : index
    %c0_13 = arith.constant 0 : index
    %24 = vector.load %arg2[%c0_12, %c0_13] : memref<256x1xi32, #tpu.memory_space<vmem>>, vector<256x1xi32>
    %c0_i32 = arith.constant 0 : i32
    %25 = vector.broadcast %c0_i32 : i32 to vector<256x1xi32>
    %26 = arith.cmpi eq, %24, %25 : vector<256x1xi32>
    %27 = arith.select %26, %14, %15 : vector<256x1xi1>, vector<256x1xf32>
    %c0_i32_14 = arith.constant 0 : i32
    %28 = vector.broadcast %c0_i32_14 : i32 to vector<256x1xi32>
    %29 = arith.cmpi eq, %24, %28 : vector<256x1xi32>
    %c0_15 = arith.constant 0 : index
    %30 = memref.load %arg8[%c0_15] : memref<2xf32, #tpu.memory_space<smem>>
    %c1 = arith.constant 1 : index
    %31 = memref.load %arg8[%c1] : memref<2xf32, #tpu.memory_space<smem>>
    %32 = vector.broadcast %30 : f32 to vector<256x1xf32>
    %33 = vector.broadcast %31 : f32 to vector<256x1xf32>
    %34 = arith.select %29, %32, %33 : vector<256x1xi1>, vector<256x1xf32>
    %c0_16 = arith.constant 0 : index
    %c0_17 = arith.constant 0 : index
    %35 = vector.load %arg3[%c0_16, %c0_17] : memref<256x1xf32, #tpu.memory_space<vmem>>, vector<256x1xf32>
    %36 = arith.mulf %34, %35 : vector<256x1xf32>
    %37 = arith.subf %23, %27 : vector<256x1xf32>
    %38 = arith.mulf %36, %37 : vector<256x1xf32>
    %39 = tpu.concatenate %38, %36 in 1 : vector<256x1xf32>, vector<256x1xf32> -> vector<256x2xf32>
    %c0_18 = arith.constant 0 : index
    %c0_19 = arith.constant 0 : index
    %40 = vector.load %arg10[%c0_18, %c0_19] : memref<256x2xf32, #tpu.memory_space<vmem>>, vector<256x2xf32>
    tpu.vector_store %arg10[%c0_18, %c0_19], %39 {strides = array<i32>} : memref<256x2xf32, #tpu.memory_space<vmem>>, vector<256x2xf32>,
    return
  }
  func.func @transform_0(%arg0: i32) -> (i32, i32) {
    %c0_i32 = arith.constant 0 : i32
    %c0_i32_0 = arith.constant 0 : i32
    return %arg0, %c0_i32 : i32, i32
  }
  func.func @transform_1(%arg0: i32) -> (i32, i32) {
    %c0_i32 = arith.constant 0 : i32
    %c0_i32_0 = arith.constant 0 : i32
    return %arg0, %c0_i32 : i32, i32
  }
  func.func @transform_2(%arg0: i32) -> (i32, i32) {
    %c0_i32 = arith.constant 0 : i32
    %c0_i32_0 = arith.constant 0 : i32
    return %arg0, %c0_i32 : i32, i32
  }
  func.func @transform_3(%arg0: i32) -> (i32, i32) {
    %c0_i32 = arith.constant 0 : i32
    %c0_i32_0 = arith.constant 0 : i32
    %c0_i32_1 = arith.constant 0 : i32
    return %c0_i32, %c0_i32_0 : i32, i32
  }
  func.func @transform_4(%arg0: i32) -> (i32, i32) {
    %c0_i32 = arith.constant 0 : i32
    %c0_i32_0 = arith.constant 0 : i32
    %c0_i32_1 = arith.constant 0 : i32
    return %c0_i32, %c0_i32_0 : i32, i32
  }
  func.func @transform_5(%arg0: i32) -> (i32, i32) {
    %c0_i32 = arith.constant 0 : i32
    %c0_i32_0 = arith.constant 0 : i32
    %c0_i32_1 = arith.constant 0 : i32
    return %c0_i32, %c0_i32_0 : i32, i32
  }
  func.func @transform_6(%arg0: i32) -> (i32, i32) {
    %c0_i32 = arith.constant 0 : i32
    %c0_i32_0 = arith.constant 0 : i32
    %c0_i32_1 = arith.constant 0 : i32
    return %c0_i32, %c0_i32_0 : i32, i32
  }
  func.func @transform_7(%arg0: i32) -> i32 {
    %c0_i32 = arith.constant 0 : i32
    %c0_i32_0 = arith.constant 0 : i32
    return %c0_i32 : i32
  }
  func.func @transform_8(%arg0: i32) -> (i32, i32) {
    %c0_i32 = arith.constant 0 : i32
    %c0_i32_0 = arith.constant 0 : i32
    return %arg0, %c0_i32 : i32, i32
  }
  func.func @transform_9(%arg0: i32) -> (i32, i32) {
    %c0_i32 = arith.constant 0 : i32
    %c0_i32_0 = arith.constant 0 : i32
    return %arg0, %c0_i32 : i32, i32
  }
}

</mosaic_0001>

<llo_original>
// kernel: tpu_custom_call.1
$region0: #{tpu_custom_call.1}
  #allocation0 [shape = 'u32[]', space=smem, size = 0x4, offset = 0x4, fixed_abs, tag = 'smem constant byte address 0x4 - core index']
  #allocation1 [shape = 'u32[144,128]{1,0:T(1,128)}', space=vmem, size = 0x12000, scoped, tag = 'internal scratch']
  %s0 = inlined_call_operand.vmem [shape: bf16[256,32], index: 0, kind: input, shape index: {}]
  %s1 = inlined_call_operand.vmem [shape: s32[256,1], index: 1, kind: input, shape index: {}]
  %s2 = inlined_call_operand.vmem [shape: f32[256,1], index: 2, kind: input, shape index: {}]
  %s3 = inlined_call_operand.vmem [shape: bf16[32,32], index: 3, kind: input, shape index: {}]
  %s4 = inlined_call_operand.vmem [shape: f32[1,32], index: 4, kind: input, shape index: {}]
  %s5 = inlined_call_operand.vmem [shape: bf16[32,128], index: 5, kind: input, shape index: {}]
  %s6 = inlined_call_operand.vmem [shape: f32[1,128], index: 6, kind: input, shape index: {}]
  %s7 = inlined_call_operand.vmem [shape: f32[2], index: 7, kind: input, shape index: {}]
  %s8 = inlined_call_operand.hbm [shape: f32[256,128], index: 8, kind: output, shape index: {0}]
  %s9 = inlined_call_operand.vmem [shape: f32[256,2], index: 9, kind: output, shape index: {1}]
  %10 = xla_tuple %s8, %s9
  %s11 = sld [smem:[#allocation0]]
  $region54: #{tpu_custom_call.1} parent=0
    _
  %s13 = ssub.s32 1, %s11
  %s14 = scalar_select 0, %s13, %s11
  $region1: #{tpu_custom_call.1} parent=0
    #allocation2 [shape = 'u8[512]{0}', space=smem, size = 0x200, scoped, tag = 'input window, operand 7, single buffered']
    #allocation3 [shape = 's32[1]{0}', space=sflag, size = 0x4, scoped, tag = 'scoped memory for tpu_custom_call.1']
    #allocation4 [shape = 's32[1]{0}', space=sflag, size = 0x4, scoped, tag = 'scoped memory for tpu_custom_call.1']
    #allocation5 [shape = 'u8[131072]{0}', space=vmem, size = 0x20000, scoped, tag = 'output window, operand 0, single buffered']
    %15 = vsyncpa [#allocation4], 0
    %16 = vsyncpa [#allocation3], 0
    // Predicated region
    $region2: #{tpu_custom_call.1} parent=1 // pred_check
      _
    $region3: #{tpu_custom_call.1} parent=1 // pred_check_branch
      %18 = sbr.rel (0) target = $region5
    $region4: #{tpu_custom_call.1} parent=1 // pred_region
      _
    $region5: #{tpu_custom_call.1} parent=1 // pred_fallthru
      _
    // Predicated region
    $region6: #{tpu_custom_call.1} parent=1 // pred_check
      _
    $region7: #{tpu_custom_call.1} parent=1 // pred_check_branch
      %20 = sbr.rel (0) target = $region9
    $region8: #{tpu_custom_call.1} parent=1 // pred_region
      _
    $region9: #{tpu_custom_call.1} parent=1 // pred_fallthru
      _
    // Predicated region
    $region10: #{tpu_custom_call.1} parent=1 // pred_check
      _
    $region11: #{tpu_custom_call.1} parent=1 // pred_check_branch
      %22 = sbr.rel (0) target = $region13
    $region12: #{tpu_custom_call.1} parent=1 // pred_region
      _
    $region13: #{tpu_custom_call.1} parent=1 // pred_fallthru
      _
    // Predicated region
    $region14: #{tpu_custom_call.1} parent=1 // pred_check
      _
    $region15: #{tpu_custom_call.1} parent=1 // pred_check_branch
      %24 = sbr.rel (0) target = $region17
    $region16: #{tpu_custom_call.1} parent=1 // pred_region
      _
    $region17: #{tpu_custom_call.1} parent=1 // pred_fallthru
      _
    // Predicated region
    $region18: #{tpu_custom_call.1} parent=1 // pred_check
      _
    $region19: #{tpu_custom_call.1} parent=1 // pred_check_branch
      %26 = sbr.rel (0) target = $region21
    $region20: #{tpu_custom_call.1} parent=1 // pred_region
      _
    $region21: #{tpu_custom_call.1} parent=1 // pred_fallthru
      _
    // Predicated region
    $region22: #{tpu_custom_call.1} parent=1 // pred_check
      _
    $region23: #{tpu_custom_call.1} parent=1 // pred_check_branch
      %28 = sbr.rel (0) target = $region25
    $region24: #{tpu_custom_call.1} parent=1 // pred_region
      _
    $region25: #{tpu_custom_call.1} parent=1 // pred_fallthru
      _
    // Predicated region
    $region26: #{tpu_custom_call.1} parent=1 // pred_check
      _
    $region27: #{tpu_custom_call.1} parent=1 // pred_check_branch
      %30 = sbr.rel (0) target = $region29
    $region28: #{tpu_custom_call.1} parent=1 // pred_region
      _
    $region29: #{tpu_custom_call.1} parent=1 // pred_fallthru
      _
    // Predicated region
    $region30: #{tpu_custom_call.1} parent=1 // pred_check
      _
    $region31: #{tpu_custom_call.1} parent=1 // pred_check_branch
      %32 = sbr.rel (0) target = $region33
    $region32: #{tpu_custom_call.1} parent=1 // pred_region
      %s34 = ssub.s32 16, 16
      %35 = vsyncadd [#allocation4], %s34
      %s37 = sshll.u32 %s7, 4
      %s38 = int_to_ptr.vmem [resolvable:$true] %s37
      %40 = dma.vmem_to_smem %s38, 16, [#allocation2], [#allocation4]
    $region33: #{tpu_custom_call.1} parent=1 // pred_fallthru
      _
    // Predicated region
    $region34: #{tpu_custom_call.1} parent=1 // pred_check
      _
    $region35: #{tpu_custom_call.1} parent=1 // pred_check_branch
      %42 = sbr.rel (0) target = $region37
    $region36: #{tpu_custom_call.1} parent=1 // pred_region
      %43 = dma.done [#allocation4], 16
    $region37: #{tpu_custom_call.1} parent=1 // pred_fallthru
      _
    %44 = sfence
    %v46 = vld [vmem:[%s0] sm:$0xf]
    %v47 = vld [vmem:[%s0 + $0x4] sm:$0xf]
    %v48 = vld [vmem:[%s0 + $0x8] sm:$0xf]
    %v49 = vld [vmem:[%s0 + $0xc] sm:$0xf]
    %v50 = vld [vmem:[%s0 + $0x10] sm:$0xf]
    %v51 = vld [vmem:[%s0 + $0x14] sm:$0xf]
    %v52 = vld [vmem:[%s0 + $0x18] sm:$0xf]
    %v53 = vld [vmem:[%s0 + $0x1c] sm:$0xf]
    %v54 = vld [vmem:[%s0 + $0x20] sm:$0xf]
    %v55 = vld [vmem:[%s0 + $0x24] sm:$0xf]
    %v56 = vld [vmem:[%s0 + $0x28] sm:$0xf]
    %v57 = vld [vmem:[%s0 + $0x2c] sm:$0xf]
    %v58 = vld [vmem:[%s0 + $0x30] sm:$0xf]
    %v59 = vld [vmem:[%s0 + $0x34] sm:$0xf]
    %v60 = vld [vmem:[%s0 + $0x38] sm:$0xf]
    %v61 = vld [vmem:[%s0 + $0x3c] sm:$0xf]
    %v62 = vld [vmem:[%s0 + $0x40] sm:$0xf]
    %v63 = vld [vmem:[%s0 + $0x44] sm:$0xf]
    %v64 = vld [vmem:[%s0 + $0x48] sm:$0xf]
    %v65 = vld [vmem:[%s0 + $0x4c] sm:$0xf]
    %v66 = vld [vmem:[%s0 + $0x50] sm:$0xf]
    %v67 = vld [vmem:[%s0 + $0x54] sm:$0xf]
    %v68 = vld [vmem:[%s0 + $0x58] sm:$0xf]
    %v69 = vld [vmem:[%s0 + $0x5c] sm:$0xf]
    %v70 = vld [vmem:[%s0 + $0x60] sm:$0xf]
    %v71 = vld [vmem:[%s0 + $0x64] sm:$0xf]
    %v72 = vld [vmem:[%s0 + $0x68] sm:$0xf]
    %v73 = vld [vmem:[%s0 + $0x6c] sm:$0xf]
    %v74 = vld [vmem:[%s0 + $0x70] sm:$0xf]
    %v75 = vld [vmem:[%s0 + $0x74] sm:$0xf]
    %v76 = vld [vmem:[%s0 + $0x78] sm:$0xf]
    %v77 = vld [vmem:[%s0 + $0x7c] sm:$0xf]
    %v78 = vld [vmem:[%s3] sm:$0xf]
    %v79 = vld [vmem:[%s3 + $0x4] sm:$0xf]
    %v80 = vld [vmem:[%s3 + $0x8] sm:$0xf]
    %v81 = vld [vmem:[%s3 + $0xc] sm:$0xf]
    %v82 = vld [vmem:[%s4] sm:$0x1]
    %v84 = vlaneseq
    %v85 = vshrl.u32 %v84, 7
    %v86 = vsub.s32 0, %v85
    %v87 = vrot.slane %v82, %v86
    %v121 = vunpack.c.l.b16 %v46
    %v122 = vunpack.c.l.b16 %v47
    %v123 = vunpack.c.l.b16 %v48
    %v124 = vunpack.c.l.b16 %v49
    %v125 = vunpack.c.l.b16 %v50
    %v126 = vunpack.c.l.b16 %v51
    %v127 = vunpack.c.l.b16 %v52
    %v128 = vunpack.c.l.b16 %v53
    %v129 = vunpack.c.l.b16 %v54
    %v130 = vunpack.c.l.b16 %v55
    %v131 = vunpack.c.l.b16 %v56
    %v132 = vunpack.c.l.b16 %v57
    %v133 = vunpack.c.l.b16 %v58
    %v134 = vunpack.c.l.b16 %v59
    %v135 = vunpack.c.l.b16 %v60
    %v136 = vunpack.c.l.b16 %v61
    %v137 = vunpack.c.l.b16 %v62
    %v138 = vunpack.c.l.b16 %v63
    %v139 = vunpack.c.l.b16 %v64
    %v140 = vunpack.c.l.b16 %v65
    %v141 = vunpack.c.l.b16 %v66
    %v142 = vunpack.c.l.b16 %v67
    %v143 = vunpack.c.l.b16 %v68
    %v144 = vunpack.c.l.b16 %v69
    %v145 = vunpack.c.l.b16 %v70
    %v146 = vunpack.c.l.b16 %v71
    %v147 = vunpack.c.l.b16 %v72
    %v148 = vunpack.c.l.b16 %v73
    %v149 = vunpack.c.l.b16 %v74
    %v150 = vunpack.c.l.b16 %v75
    %v151 = vunpack.c.l.b16 %v76
    %v152 = vunpack.c.l.b16 %v77
    %v153 = vpack.c.b16 %v122, %v121
    %v154 = vpack.c.b16 %v124, %v123
    %v155 = vpack.c.b16 %v126, %v125
    %v156 = vpack.c.b16 %v128, %v127
    %v157 = vpack.c.b16 %v130, %v129
    %v158 = vpack.c.b16 %v132, %v131
    %v159 = vpack.c.b16 %v134, %v133
    %v160 = vpack.c.b16 %v136, %v135
    %v161 = vpack.c.b16 %v138, %v137
    %v162 = vpack.c.b16 %v140, %v139
    %v163 = vpack.c.b16 %v142, %v141
    %v164 = vpack.c.b16 %v144, %v143
    %v165 = vpack.c.b16 %v146, %v145
    %v166 = vpack.c.b16 %v148, %v147
    %v167 = vpack.c.b16 %v150, %v149
    %v168 = vpack.c.b16 %v152, %v151
    %v173 = vunpack.c.l.b16 %v78
    %v174 = vunpack.c.l.b16 %v79
    %v175 = vunpack.c.l.b16 %v80
    %v176 = vunpack.c.l.b16 %v81
    %v177 = vpack.c.b16 %v174, %v173
    %v178 = vpack.c.b16 %v176, %v175
    %vm181 = vcmask 261120
    %v183 = vsel %vm181, %v153, 0
    %v186 = vsel %vm181, %v154, 0
    %v189 = vsel %vm181, %v155, 0
    %v192 = vsel %vm181, %v156, 0
    %v195 = vsel %vm181, %v157, 0
    %v198 = vsel %vm181, %v158, 0
    %v201 = vsel %vm181, %v159, 0
    %v204 = vsel %vm181, %v160, 0
    %v207 = vsel %vm181, %v161, 0
    %v210 = vsel %vm181, %v162, 0
    %v213 = vsel %vm181, %v163, 0
    %v216 = vsel %vm181, %v164, 0
    %v219 = vsel %vm181, %v165, 0
    %v222 = vsel %vm181, %v166, 0
    %v225 = vsel %vm181, %v167, 0
    %v228 = vsel %vm181, %v168, 0
    %230 = vmatprep.subr.bf16.mxu0 0
    %231 = vmatpush1.bf16.msra.mxu0 %v177
    %232 = vmatprep.subr.bf16.mxu0 0
    %233 = vmatpush1.bf16.msra.mxu0 %v178
    %234 = vmatprep.subr.bf16.mxu0 0
    %235 = vmatpush1.bf16.msra.mxu0 0
    %236 = vmatprep.subr.bf16.mxu0 0
    %237 = vmatpush1.bf16.msra.mxu0 0
    %238 = vmatprep.subr.bf16.mxu0 0
    %239 = vmatpush1.bf16.msra.mxu0 0
    %240 = vmatprep.subr.bf16.mxu0 0
    %241 = vmatpush1.bf16.msra.mxu0 0
    %242 = vmatprep.subr.bf16.mxu0 0
    %243 = vmatpush1.bf16.msra.mxu0 0
    %244 = vmatprep.subr.bf16.mxu0 0
    %245 = vmatpush1.bf16.msra.mxu0 0
    %246 = vmatprep.subr.bf16.mxu0 0
    %247 = vmatpush1.bf16.msra.mxu0 0
    %248 = vmatprep.subr.bf16.mxu0 0
    %249 = vmatpush1.bf16.msra.mxu0 0
    %250 = vmatprep.subr.bf16.mxu0 0
    %251 = vmatpush1.bf16.msra.mxu0 0
    %252 = vmatprep.subr.bf16.mxu0 0
    %253 = vmatpush1.bf16.msra.mxu0 0
    %254 = vmatprep.subr.bf16.mxu0 0
    %255 = vmatpush1.bf16.msra.mxu0 0
    %256 = vmatprep.subr.bf16.mxu0 0
    %257 = vmatpush1.bf16.msra.mxu0 0
    %258 = vmatprep.subr.bf16.mxu0 0
    %259 = vmatpush1.bf16.msra.mxu0 0
    %260 = vmatprep.subr.bf16.mxu0 0
    %261 = vmatpush1.bf16.msra.mxu0 0
    %262 = vmatprep.mubr.bf16.mxu0 0
    %263 = vmatmul.mubr.bf16.gmra.mrb[0].mxu0 %v183
    %v264 = vpop.f32.mrb[0].mxu0
    %v265 = vadd.f32 %v87, %v264
    %v266 = vpop.f32.mrb[0].mxu0
    %v267 = vpop.f32.mrb[0].mxu0
    %v268 = vadd.f32 %v87, %v267
    %v269 = vpop.f32.mrb[0].mxu0
    %270 = vmatprep.mubr.bf16.mxu0 0
    %271 = vmatmul.mubr.bf16.gmra.mrb[0].mxu0 %v186
    %v272 = vpop.f32.mrb[0].mxu0
    %v273 = vadd.f32 %v87, %v272
    %v274 = vpop.f32.mrb[0].mxu0
    %v275 = vpop.f32.mrb[0].mxu0
    %v276 = vadd.f32 %v87, %v275
    %v277 = vpop.f32.mrb[0].mxu0
    %278 = vmatprep.mubr.bf16.mxu0 0
    %279 = vmatmul.mubr.bf16.gmra.mrb[0].mxu0 %v189
    %v280 = vpop.f32.mrb[0].mxu0
    %v281 = vadd.f32 %v87, %v280
    %v282 = vpop.f32.mrb[0].mxu0
    %v283 = vpop.f32.mrb[0].mxu0
    %v284 = vadd.f32 %v87, %v283
    %v285 = vpop.f32.mrb[0].mxu0
    %286 = vmatprep.mubr.bf16.mxu0 0
    %287 = vmatmul.mubr.bf16.gmra.mrb[0].mxu0 %v192
    %v288 = vpop.f32.mrb[0].mxu0
    %v289 = vadd.f32 %v87, %v288
    %v290 = vpop.f32.mrb[0].mxu0
    %v291 = vpop.f32.mrb[0].mxu0
    %v292 = vadd.f32 %v87, %v291
    %v293 = vpop.f32.mrb[0].mxu0
    %294 = vmatprep.mubr.bf16.mxu0 0
    %295 = vmatmul.mubr.bf16.gmra.mrb[0].mxu0 %v195
    %v296 = vpop.f32.mrb[0].mxu0
    %v297 = vadd.f32 %v87, %v296
    %v298 = vpop.f32.mrb[0].mxu0
    %v299 = vpop.f32.mrb[0].mxu0
    %v300 = vadd.f32 %v87, %v299
    %v301 = vpop.f32.mrb[0].mxu0
    %302 = vmatprep.mubr.bf16.mxu0 0
    %303 = vmatmul.mubr.bf16.gmra.mrb[0].mxu0 %v198
    %v304 = vpop.f32.mrb[0].mxu0
    %v305 = vadd.f32 %v87, %v304
    %v306 = vpop.f32.mrb[0].mxu0
    %v307 = vpop.f32.mrb[0].mxu0
    %v308 = vadd.f32 %v87, %v307
    %v309 = vpop.f32.mrb[0].mxu0
    %310 = vmatprep.mubr.bf16.mxu0 0
    %311 = vmatmul.mubr.bf16.gmra.mrb[0].mxu0 %v201
    %v312 = vpop.f32.mrb[0].mxu0
    %v313 = vadd.f32 %v87, %v312
    %v314 = vpop.f32.mrb[0].mxu0
    %v315 = vpop.f32.mrb[0].mxu0
    %v316 = vadd.f32 %v87, %v315
    %v317 = vpop.f32.mrb[0].mxu0
    %318 = vmatprep.mubr.bf16.mxu0 0
    %319 = vmatmul.mubr.bf16.gmra.mrb[0].mxu0 %v204
    %v320 = vpop.f32.mrb[0].mxu0
    %v321 = vadd.f32 %v87, %v320
    %v322 = vpop.f32.mrb[0].mxu0
    %v323 = vpop.f32.mrb[0].mxu0
    %v324 = vadd.f32 %v87, %v323
    %v325 = vpop.f32.mrb[0].mxu0
    %326 = vmatprep.mubr.bf16.mxu0 0
    %327 = vmatmul.mubr.bf16.gmra.mrb[0].mxu0 %v207
    %v328 = vpop.f32.mrb[0].mxu0
    %v329 = vadd.f32 %v87, %v328
    %v330 = vpop.f32.mrb[0].mxu0
    %v331 = vpop.f32.mrb[0].mxu0
    %v332 = vadd.f32 %v87, %v331
    %v333 = vpop.f32.mrb[0].mxu0
    %334 = vmatprep.mubr.bf16.mxu0 0
    %335 = vmatmul.mubr.bf16.gmra.mrb[0].mxu0 %v210
    %v336 = vpop.f32.mrb[0].mxu0
    %v337 = vadd.f32 %v87, %v336
    %v338 = vpop.f32.mrb[0].mxu0
    %v339 = vpop.f32.mrb[0].mxu0
    %v340 = vadd.f32 %v87, %v339
    %v341 = vpop.f32.mrb[0].mxu0
    %342 = vmatprep.mubr.bf16.mxu0 0
    %343 = vmatmul.mubr.bf16.gmra.mrb[0].mxu0 %v213
    %v344 = vpop.f32.mrb[0].mxu0
    %v345 = vadd.f32 %v87, %v344
    %v346 = vpop.f32.mrb[0].mxu0
    %v347 = vpop.f32.mrb[0].mxu0
    %v348 = vadd.f32 %v87, %v347
    %v349 = vpop.f32.mrb[0].mxu0
    %350 = vmatprep.mubr.bf16.mxu0 0
    %351 = vmatmul.mubr.bf16.gmra.mrb[0].mxu0 %v216
    %v352 = vpop.f32.mrb[0].mxu0
    %v353 = vadd.f32 %v87, %v352
    %v354 = vpop.f32.mrb[0].mxu0
    %v355 = vpop.f32.mrb[0].mxu0
    %v356 = vadd.f32 %v87, %v355
    %v357 = vpop.f32.mrb[0].mxu0
    %358 = vmatprep.mubr.bf16.mxu0 0
    %359 = vmatmul.mubr.bf16.gmra.mrb[0].mxu0 %v219
    %v360 = vpop.f32.mrb[0].mxu0
    %v361 = vadd.f32 %v87, %v360
    %v362 = vpop.f32.mrb[0].mxu0
    %v363 = vpop.f32.mrb[0].mxu0
    %v364 = vadd.f32 %v87, %v363
    %v365 = vpop.f32.mrb[0].mxu0
    %366 = vmatprep.mubr.bf16.mxu0 0
    %367 = vmatmul.mubr.bf16.gmra.mrb[0].mxu0 %v222
    %v368 = vpop.f32.mrb[0].mxu0
    %v369 = vadd.f32 %v87, %v368
    %v370 = vpop.f32.mrb[0].mxu0
    %v371 = vpop.f32.mrb[0].mxu0
    %v372 = vadd.f32 %v87, %v371
    %v373 = vpop.f32.mrb[0].mxu0
    %374 = vmatprep.mubr.bf16.mxu0 0
    %375 = vmatmul.mubr.bf16.gmra.mrb[0].mxu0 %v225
    %v376 = vpop.f32.mrb[0].mxu0
    %v377 = vadd.f32 %v87, %v376
    %v378 = vpop.f32.mrb[0].mxu0
    %v379 = vpop.f32.mrb[0].mxu0
    %v380 = vadd.f32 %v87, %v379
    %v381 = vpop.f32.mrb[0].mxu0
    %382 = vmatprep.mubr.bf16.mxu0 0
    %383 = vmatmul.mubr.bf16.gmra.mrb[0].mxu0 %v228
    %v384 = vpop.f32.mrb[0].mxu0
    %v385 = vadd.f32 %v87, %v384
    %v386 = vpop.f32.mrb[0].mxu0
    %v387 = vpop.f32.mrb[0].mxu0
    %v388 = vadd.f32 %v87, %v387
    %v389 = vpop.f32.mrb[0].mxu0
    %390 = vdwg.mxu0
    %v391 = vtanh.pop %v265
    %v392 = vtanh.pop %v268
    %v393 = vtanh.pop %v273
    %v394 = vtanh.pop %v276
    %v395 = vtanh.pop %v281
    %v396 = vtanh.pop %v284
    %v397 = vtanh.pop %v289
    %v398 = vtanh.pop %v292
    %v399 = vtanh.pop %v297
    %v400 = vtanh.pop %v300
    %v401 = vtanh.pop %v305
    %v402 = vtanh.pop %v308
    %v403 = vtanh.pop %v313
    %v404 = vtanh.pop %v316
    %v405 = vtanh.pop %v321
    %v406 = vtanh.pop %v324
    %v407 = vtanh.pop %v329
    %v408 = vtanh.pop %v332
    %v409 = vtanh.pop %v337
    %v410 = vtanh.pop %v340
    %v411 = vtanh.pop %v345
    %v412 = vtanh.pop %v348
    %v413 = vtanh.pop %v353
    %v414 = vtanh.pop %v356
    %v415 = vtanh.pop %v361
    %v416 = vtanh.pop %v364
    %v417 = vtanh.pop %v369
    %v418 = vtanh.pop %v372
    %v419 = vtanh.pop %v377
    %v420 = vtanh.pop %v380
    %v421 = vtanh.pop %v385
    %v422 = vtanh.pop %v388
    %v423 = vpack.c.bf16 %v392, %v391
    %v424 = vpack.c.bf16 %v394, %v393
    %v425 = vpack.c.bf16 %v396, %v395
    %v426 = vpack.c.bf16 %v398, %v397
    %v427 = vpack.c.bf16 %v400, %v399
    %v428 = vpack.c.bf16 %v402, %v401
    %v429 = vpack.c.bf16 %v404, %v403
    %v430 = vpack.c.bf16 %v406, %v405
    %v431 = vpack.c.bf16 %v408, %v407
    %v432 = vpack.c.bf16 %v410, %v409
    %v433 = vpack.c.bf16 %v412, %v411
    %v434 = vpack.c.bf16 %v414, %v413
    %v435 = vpack.c.bf16 %v416, %v415
    %v436 = vpack.c.bf16 %v418, %v417
    %v437 = vpack.c.bf16 %v420, %v419
    %v438 = vpack.c.bf16 %v422, %v421
    %v439 = vld [vmem:[%s5] sm:$0xf]
    %v440 = vld [vmem:[%s5 + $0x4] sm:$0xf]
    %v441 = vld [vmem:[%s5 + $0x8] sm:$0xf]
    %v442 = vld [vmem:[%s5 + $0xc] sm:$0xf]
    %v443 = vld [vmem:[%s6] sm:$0x1]
    %v445 = vlaneseq
    %v446 = vshrl.u32 %v445, 7
    %v447 = vsub.s32 0, %v446
    %v448 = vrot.slane %v443, %v447
    %v454 = vunpack.c.l.b16 %v439
    %v455 = vunpack.c.l.b16 %v440
    %v456 = vunpack.c.l.b16 %v441
    %v457 = vunpack.c.l.b16 %v442
    %v458 = vpack.c.b16 %v455, %v454
    %v459 = vpack.c.b16 %v457, %v456
    %v463 = vsel %vm181, %v423, 0
    %v466 = vsel %vm181, %v424, 0
    %v469 = vsel %vm181, %v425, 0
    %v472 = vsel %vm181, %v426, 0
    %v475 = vsel %vm181, %v427, 0
    %v478 = vsel %vm181, %v428, 0
    %v481 = vsel %vm181, %v429, 0
    %v484 = vsel %vm181, %v430, 0
    %v487 = vsel %vm181, %v431, 0
    %v490 = vsel %vm181, %v432, 0
    %v493 = vsel %vm181, %v433, 0
    %v496 = vsel %vm181, %v434, 0
    %v499 = vsel %vm181, %v435, 0
    %v502 = vsel %vm181, %v436, 0
    %v505 = vsel %vm181, %v437, 0
    %v508 = vsel %vm181, %v438, 0
    %510 = vmatprep.subr.bf16.mxu0 0
    %511 = vmatpush1.bf16.msra.mxu0 %v458
    %512 = vmatprep.subr.bf16.mxu0 0
    %513 = vmatpush1.bf16.msra.mxu0 %v459
    %514 = vmatprep.subr.bf16.mxu0 0
    %515 = vmatpush1.bf16.msra.mxu0 0
    %516 = vmatprep.subr.bf16.mxu0 0
    %517 = vmatpush1.bf16.msra.mxu0 0
    %518 = vmatprep.subr.bf16.mxu0 0
    %519 = vmatpush1.bf16.msra.mxu0 0
    %520 = vmatprep.subr.bf16.mxu0 0
    %521 = vmatpush1.bf16.msra.mxu0 0
    %522 = vmatprep.subr.bf16.mxu0 0
    %523 = vmatpush1.bf16.msra.mxu0 0
    %524 = vmatprep.subr.bf16.mxu0 0
    %525 = vmatpush1.bf16.msra.mxu0 0
    %526 = vmatprep.subr.bf16.mxu0 0
    %527 = vmatpush1.bf16.msra.mxu0 0
    %528 = vmatprep.subr.bf16.mxu0 0
    %529 = vmatpush1.bf16.msra.mxu0 0
    %530 = vmatprep.subr.bf16.mxu0 0
    %531 = vmatpush1.bf16.msra.mxu0 0
    %532 = vmatprep.subr.bf16.mxu0 0
    %533 = vmatpush1.bf16.msra.mxu0 0
    %534 = vmatprep.subr.bf16.mxu0 0
    %535 = vmatpush1.bf16.msra.mxu0 0
    %536 = vmatprep.subr.bf16.mxu0 0
    %537 = vmatpush1.bf16.msra.mxu0 0
    %538 = vmatprep.subr.bf16.mxu0 0
    %539 = vmatpush1.bf16.msra.mxu0 0
    %540 = vmatprep.subr.bf16.mxu0 0
    %541 = vmatpush1.bf16.msra.mxu0 0
    %542 = vmatprep.mubr.bf16.mxu0 0
    %543 = vmatmul.mubr.bf16.gmra.mrb[0].mxu0 %v463
    %v544 = vpop.f32.mrb[0].mxu0
    %v545 = vadd.f32 %v448, %v544
    %v546 = vpop.f32.mrb[0].mxu0
    %v547 = vpop.f32.mrb[0].mxu0
    %v548 = vadd.f32 %v448, %v547
    %v549 = vpop.f32.mrb[0].mxu0
    %550 = vmatprep.mubr.bf16.mxu0 0
    %551 = vmatmul.mubr.bf16.gmra.mrb[0].mxu0 %v466
    %v552 = vpop.f32.mrb[0].mxu0
    %v553 = vadd.f32 %v448, %v552
    %v554 = vpop.f32.mrb[0].mxu0
    %v555 = vpop.f32.mrb[0].mxu0
    %v556 = vadd.f32 %v448, %v555
    %v557 = vpop.f32.mrb[0].mxu0
    %558 = vmatprep.mubr.bf16.mxu0 0
    %559 = vmatmul.mubr.bf16.gmra.mrb[0].mxu0 %v469
    %v560 = vpop.f32.mrb[0].mxu0
    %v561 = vadd.f32 %v448, %v560
    %v562 = vpop.f32.mrb[0].mxu0
    %v563 = vpop.f32.mrb[0].mxu0
    %v564 = vadd.f32 %v448, %v563
    %v565 = vpop.f32.mrb[0].mxu0
    %566 = vmatprep.mubr.bf16.mxu0 0
    %567 = vmatmul.mubr.bf16.gmra.mrb[0].mxu0 %v472
    %v568 = vpop.f32.mrb[0].mxu0
    %v569 = vadd.f32 %v448, %v568
    %v570 = vpop.f32.mrb[0].mxu0
    %v571 = vpop.f32.mrb[0].mxu0
    %v572 = vadd.f32 %v448, %v571
    %v573 = vpop.f32.mrb[0].mxu0
    %574 = vmatprep.mubr.bf16.mxu0 0
    %575 = vmatmul.mubr.bf16.gmra.mrb[0].mxu0 %v475
    %v576 = vpop.f32.mrb[0].mxu0
    %v577 = vadd.f32 %v448, %v576
    %v578 = vpop.f32.mrb[0].mxu0
    %v579 = vpop.f32.mrb[0].mxu0
    %v580 = vadd.f32 %v448, %v579
    %v581 = vpop.f32.mrb[0].mxu0
    %582 = vmatprep.mubr.bf16.mxu0 0
    %583 = vmatmul.mubr.bf16.gmra.mrb[0].mxu0 %v478
    %v584 = vpop.f32.mrb[0].mxu0
    %v585 = vadd.f32 %v448, %v584
    %v586 = vpop.f32.mrb[0].mxu0
    %v587 = vpop.f32.mrb[0].mxu0
    %v588 = vadd.f32 %v448, %v587
    %v589 = vpop.f32.mrb[0].mxu0
    %590 = vmatprep.mubr.bf16.mxu0 0
    %591 = vmatmul.mubr.bf16.gmra.mrb[0].mxu0 %v481
    %v592 = vpop.f32.mrb[0].mxu0
    %v593 = vadd.f32 %v448, %v592
    %v594 = vpop.f32.mrb[0].mxu0
    %v595 = vpop.f32.mrb[0].mxu0
    %v596 = vadd.f32 %v448, %v595
    %v597 = vpop.f32.mrb[0].mxu0
    %598 = vmatprep.mubr.bf16.mxu0 0
    %599 = vmatmul.mubr.bf16.gmra.mrb[0].mxu0 %v484
    %v600 = vpop.f32.mrb[0].mxu0
    %v601 = vadd.f32 %v448, %v600
    %v602 = vpop.f32.mrb[0].mxu0
    %v603 = vpop.f32.mrb[0].mxu0
    %v604 = vadd.f32 %v448, %v603
    %v605 = vpop.f32.mrb[0].mxu0
    %606 = vmatprep.mubr.bf16.mxu0 0
    %607 = vmatmul.mubr.bf16.gmra.mrb[0].mxu0 %v487
    %v608 = vpop.f32.mrb[0].mxu0
    %v609 = vadd.f32 %v448, %v608
    %v610 = vpop.f32.mrb[0].mxu0
    %v611 = vpop.f32.mrb[0].mxu0
    %v612 = vadd.f32 %v448, %v611
    %v613 = vpop.f32.mrb[0].mxu0
    %614 = vmatprep.mubr.bf16.mxu0 0
    %615 = vmatmul.mubr.bf16.gmra.mrb[0].mxu0 %v490
    %v616 = vpop.f32.mrb[0].mxu0
    %v617 = vadd.f32 %v448, %v616
    %v618 = vpop.f32.mrb[0].mxu0
    %v619 = vpop.f32.mrb[0].mxu0
    %v620 = vadd.f32 %v448, %v619
    %v621 = vpop.f32.mrb[0].mxu0
    %622 = vmatprep.mubr.bf16.mxu0 0
    %623 = vmatmul.mubr.bf16.gmra.mrb[0].mxu0 %v493
    %v624 = vpop.f32.mrb[0].mxu0
    %v625 = vadd.f32 %v448, %v624
    %v626 = vpop.f32.mrb[0].mxu0
    %v627 = vpop.f32.mrb[0].mxu0
    %v628 = vadd.f32 %v448, %v627
    %v629 = vpop.f32.mrb[0].mxu0
    %630 = vmatprep.mubr.bf16.mxu0 0
    %631 = vmatmul.mubr.bf16.gmra.mrb[0].mxu0 %v496
    %v632 = vpop.f32.mrb[0].mxu0
    %v633 = vadd.f32 %v448, %v632
    %v634 = vpop.f32.mrb[0].mxu0
    %v635 = vpop.f32.mrb[0].mxu0
    %v636 = vadd.f32 %v448, %v635
    %v637 = vpop.f32.mrb[0].mxu0
    %638 = vmatprep.mubr.bf16.mxu0 0
    %639 = vmatmul.mubr.bf16.gmra.mrb[0].mxu0 %v499
    %v640 = vpop.f32.mrb[0].mxu0
    %v641 = vadd.f32 %v448, %v640
    %v642 = vpop.f32.mrb[0].mxu0
    %v643 = vpop.f32.mrb[0].mxu0
    %v644 = vadd.f32 %v448, %v643
    %v645 = vpop.f32.mrb[0].mxu0
    %646 = vmatprep.mubr.bf16.mxu0 0
    %647 = vmatmul.mubr.bf16.gmra.mrb[0].mxu0 %v502
    %v648 = vpop.f32.mrb[0].mxu0
    %v649 = vadd.f32 %v448, %v648
    %v650 = vpop.f32.mrb[0].mxu0
    %v651 = vpop.f32.mrb[0].mxu0
    %v652 = vadd.f32 %v448, %v651
    %v653 = vpop.f32.mrb[0].mxu0
    %654 = vmatprep.mubr.bf16.mxu0 0
    %655 = vmatmul.mubr.bf16.gmra.mrb[0].mxu0 %v505
    %v656 = vpop.f32.mrb[0].mxu0
    %v657 = vadd.f32 %v448, %v656
    %v658 = vpop.f32.mrb[0].mxu0
    %v659 = vpop.f32.mrb[0].mxu0
    %v660 = vadd.f32 %v448, %v659
    %v661 = vpop.f32.mrb[0].mxu0
    %662 = vmatprep.mubr.bf16.mxu0 0
    %663 = vmatmul.mubr.bf16.gmra.mrb[0].mxu0 %v508
    %v664 = vpop.f32.mrb[0].mxu0
    %v665 = vadd.f32 %v448, %v664
    %v666 = vpop.f32.mrb[0].mxu0
    %v667 = vpop.f32.mrb[0].mxu0
    %v668 = vadd.f32 %v448, %v667
    %v669 = vpop.f32.mrb[0].mxu0
    %670 = vdwg.mxu0
    %671 = vst [vmem:[#allocation5] sm:$0xff] %v545
    %672 = vst [vmem:[#allocation5 + $0x8] sm:$0xff] %v548
    %673 = vst [vmem:[#allocation5 + $0x10] sm:$0xff] %v553
    %674 = vst [vmem:[#allocation5 + $0x18] sm:$0xff] %v556
    %675 = vst [vmem:[#allocation5 + $0x20] sm:$0xff] %v561
    %676 = vst [vmem:[#allocation5 + $0x28] sm:$0xff] %v564
    %677 = vst [vmem:[#allocation5 + $0x30] sm:$0xff] %v569
    %678 = vst [vmem:[#allocation5 + $0x38] sm:$0xff] %v572
    %679 = vst [vmem:[#allocation5 + $0x40] sm:$0xff] %v577
    %680 = vst [vmem:[#allocation5 + $0x48] sm:$0xff] %v580
    %681 = vst [vmem:[#allocation5 + $0x50] sm:$0xff] %v585
    %682 = vst [vmem:[#allocation5 + $0x58] sm:$0xff] %v588
    %683 = vst [vmem:[#allocation5 + $0x60] sm:$0xff] %v593
    %684 = vst [vmem:[#allocation5 + $0x68] sm:$0xff] %v596
    %685 = vst [vmem:[#allocation5 + $0x70] sm:$0xff] %v601
    %686 = vst [vmem:[#allocation5 + $0x78] sm:$0xff] %v604
    %687 = vst [vmem:[#allocation5 + $0x80] sm:$0xff] %v609
    %688 = vst [vmem:[#allocation5 + $0x88] sm:$0xff] %v612
    %689 = vst [vmem:[#allocation5 + $0x90] sm:$0xff] %v617
    %690 = vst [vmem:[#allocation5 + $0x98] sm:$0xff] %v620
    %691 = vst [vmem:[#allocation5 + $0xa0] sm:$0xff] %v625
    %692 = vst [vmem:[#allocation5 + $0xa8] sm:$0xff] %v628
    %693 = vst [vmem:[#allocation5 + $0xb0] sm:$0xff] %v633
    %694 = vst [vmem:[#allocation5 + $0xb8] sm:$0xff] %v636
    %695 = vst [vmem:[#allocation5 + $0xc0] sm:$0xff] %v641
    %696 = vst [vmem:[#allocation5 + $0xc8] sm:$0xff] %v644
    %697 = vst [vmem:[#allocation5 + $0xd0] sm:$0xff] %v649
    %698 = vst [vmem:[#allocation5 + $0xd8] sm:$0xff] %v652
    %699 = vst [vmem:[#allocation5 + $0xe0] sm:$0xff] %v657
    %700 = vst [vmem:[#allocation5 + $0xe8] sm:$0xff] %v660
    %701 = vst [vmem:[#allocation5 + $0xf0] sm:$0xff] %v665
    %702 = vst [vmem:[#allocation5 + $0xf8] sm:$0xff] %v668
    %735 = vrot.lane.b32.xlu0 %v545, 127
    %v736 = vpop.permute.xlu0 %735
    %737 = vrot.lane.b32.xlu0 %v548, 127
    %v738 = vpop.permute.xlu0 %737
    %739 = vrot.lane.b32.xlu0 %v553, 127
    %v740 = vpop.permute.xlu0 %739
    %741 = vrot.lane.b32.xlu0 %v556, 127
    %v742 = vpop.permute.xlu0 %741
    %743 = vrot.lane.b32.xlu0 %v561, 127
    %v744 = vpop.permute.xlu0 %743
    %745 = vrot.lane.b32.xlu0 %v564, 127
    %v746 = vpop.permute.xlu0 %745
    %747 = vrot.lane.b32.xlu0 %v569, 127
    %v748 = vpop.permute.xlu0 %747
    %749 = vrot.lane.b32.xlu0 %v572, 127
    %v750 = vpop.permute.xlu0 %749
    %751 = vrot.lane.b32.xlu0 %v577, 127
    %v752 = vpop.permute.xlu0 %751
    %753 = vrot.lane.b32.xlu0 %v580, 127
    %v754 = vpop.permute.xlu0 %753
    %755 = vrot.lane.b32.xlu0 %v585, 127
    %v756 = vpop.permute.xlu0 %755
    %757 = vrot.lane.b32.xlu0 %v588, 127
    %v758 = vpop.permute.xlu0 %757
    %759 = vrot.lane.b32.xlu0 %v593, 127
    %v760 = vpop.permute.xlu0 %759
    %761 = vrot.lane.b32.xlu0 %v596, 127
    %v762 = vpop.permute.xlu0 %761
    %763 = vrot.lane.b32.xlu0 %v601, 127
    %v764 = vpop.permute.xlu0 %763
    %765 = vrot.lane.b32.xlu0 %v604, 127
    %v766 = vpop.permute.xlu0 %765
    %767 = vrot.lane.b32.xlu0 %v609, 127
    %v768 = vpop.permute.xlu0 %767
    %769 = vrot.lane.b32.xlu0 %v612, 127
    %v770 = vpop.permute.xlu0 %769
    %771 = vrot.lane.b32.xlu0 %v617, 127
    %v772 = vpop.permute.xlu0 %771
    %773 = vrot.lane.b32.xlu0 %v620, 127
    %v774 = vpop.permute.xlu0 %773
    %775 = vrot.lane.b32.xlu0 %v625, 127
    %v776 = vpop.permute.xlu0 %775
    %777 = vrot.lane.b32.xlu0 %v628, 127
    %v778 = vpop.permute.xlu0 %777
    %779 = vrot.lane.b32.xlu0 %v633, 127
    %v780 = vpop.permute.xlu0 %779
    %781 = vrot.lane.b32.xlu0 %v636, 127
    %v782 = vpop.permute.xlu0 %781
    %783 = vrot.lane.b32.xlu0 %v641, 127
    %v784 = vpop.permute.xlu0 %783
    %785 = vrot.lane.b32.xlu0 %v644, 127
    %v786 = vpop.permute.xlu0 %785
    %787 = vrot.lane.b32.xlu0 %v649, 127
    %v788 = vpop.permute.xlu0 %787
    %789 = vrot.lane.b32.xlu0 %v652, 127
    %v790 = vpop.permute.xlu0 %789
    %791 = vrot.lane.b32.xlu0 %v657, 127
    %v792 = vpop.permute.xlu0 %791
    %793 = vrot.lane.b32.xlu0 %v660, 127
    %v794 = vpop.permute.xlu0 %793
    %795 = vrot.lane.b32.xlu0 %v665, 127
    %v796 = vpop.permute.xlu0 %795
    %797 = vrot.lane.b32.xlu0 %v668, 127
    %v798 = vpop.permute.xlu0 %797
    %v831 = vmax.f32 %v545, %v736
    %v832 = vmax.f32 %v548, %v738
    %v833 = vmax.f32 %v553, %v740
    %v834 = vmax.f32 %v556, %v742
    %v835 = vmax.f32 %v561, %v744
    %v836 = vmax.f32 %v564, %v746
    %v837 = vmax.f32 %v569, %v748
    %v838 = vmax.f32 %v572, %v750
    %v839 = vmax.f32 %v577, %v752
    %v840 = vmax.f32 %v580, %v754
    %v841 = vmax.f32 %v585, %v756
    %v842 = vmax.f32 %v588, %v758
    %v843 = vmax.f32 %v593, %v760
    %v844 = vmax.f32 %v596, %v762
    %v845 = vmax.f32 %v601, %v764
    %v846 = vmax.f32 %v604, %v766
    %v847 = vmax.f32 %v609, %v768
    %v848 = vmax.f32 %v612, %v770
    %v849 = vmax.f32 %v617, %v772
    %v850 = vmax.f32 %v620, %v774
    %v851 = vmax.f32 %v625, %v776
    %v852 = vmax.f32 %v628, %v778
    %v853 = vmax.f32 %v633, %v780
    %v854 = vmax.f32 %v636, %v782
    %v855 = vmax.f32 %v641, %v784
    %v856 = vmax.f32 %v644, %v786
    %v857 = vmax.f32 %v649, %v788
    %v858 = vmax.f32 %v652, %v790
    %v859 = vmax.f32 %v657, %v792
    %v860 = vmax.f32 %v660, %v794
    %v861 = vmax.f32 %v665, %v796
    %v862 = vmax.f32 %v668, %v798
    %v863 = vsub.f32 %v545, %v831
    %v864 = vsub.f32 %v548, %v832
    %v865 = vsub.f32 %v553, %v833
    %v866 = vsub.f32 %v556, %v834
    %v867 = vsub.f32 %v561, %v835
    %v868 = vsub.f32 %v564, %v836
    %v869 = vsub.f32 %v569, %v837
    %v870 = vsub.f32 %v572, %v838
    %v871 = vsub.f32 %v577, %v839
    %v872 = vsub.f32 %v580, %v840
    %v873 = vsub.f32 %v585, %v841
    %v874 = vsub.f32 %v588, %v842
    %v875 = vsub.f32 %v593, %v843
    %v876 = vsub.f32 %v596, %v844
    %v877 = vsub.f32 %v601, %v845
    %v878 = vsub.f32 %v604, %v846
    %v879 = vsub.f32 %v609, %v847
    %v880 = vsub.f32 %v612, %v848
    %v881 = vsub.f32 %v617, %v849
    %v882 = vsub.f32 %v620, %v850
    %v883 = vsub.f32 %v625, %v851
    %v884 = vsub.f32 %v628, %v852
    %v885 = vsub.f32 %v633, %v853
    %v886 = vsub.f32 %v636, %v854
    %v887 = vsub.f32 %v641, %v855
    %v888 = vsub.f32 %v644, %v856
    %v889 = vsub.f32 %v649, %v857
    %v890 = vsub.f32 %v652, %v858
    %v891 = vsub.f32 %v657, %v859
    %v892 = vsub.f32 %v660, %v860
    %v893 = vsub.f32 %v665, %v861
    %v894 = vsub.f32 %v668, %v862
    %v895 = vmul.f32 %v863, 1.442695
    %v896 = vpow.pop %v895
    %v897 = vmul.f32 %v864, 1.442695
    %v898 = vpow.pop %v897
    %v899 = vmul.f32 %v865, 1.442695
    %v900 = vpow.pop %v899
    %v901 = vmul.f32 %v866, 1.442695
    %v902 = vpow.pop %v901
    %v903 = vmul.f32 %v867, 1.442695
    %v904 = vpow.pop %v903
    %v905 = vmul.f32 %v868, 1.442695
    %v906 = vpow.pop %v905
    %v907 = vmul.f32 %v869, 1.442695
    %v908 = vpow.pop %v907
    %v909 = vmul.f32 %v870, 1.442695
    %v910 = vpow.pop %v909
    %v911 = vmul.f32 %v871, 1.442695
    %v912 = vpow.pop %v911
    %v913 = vmul.f32 %v872, 1.442695
    %v914 = vpow.pop %v913
    %v915 = vmul.f32 %v873, 1.442695
    %v916 = vpow.pop %v915
    %v917 = vmul.f32 %v874, 1.442695
    %v918 = vpow.pop %v917
    %v919 = vmul.f32 %v875, 1.442695
    %v920 = vpow.pop %v919
    %v921 = vmul.f32 %v876, 1.442695
    %v922 = vpow.pop %v921
    %v923 = vmul.f32 %v877, 1.442695
    %v924 = vpow.pop %v923
    %v925 = vmul.f32 %v878, 1.442695
    %v926 = vpow.pop %v925
    %v927 = vmul.f32 %v879, 1.442695
    %v928 = vpow.pop %v927
    %v929 = vmul.f32 %v880, 1.442695
    %v930 = vpow.pop %v929
    %v931 = vmul.f32 %v881, 1.442695
    %v932 = vpow.pop %v931
    %v933 = vmul.f32 %v882, 1.442695
    %v934 = vpow.pop %v933
    %v935 = vmul.f32 %v883, 1.442695
    %v936 = vpow.pop %v935
    %v937 = vmul.f32 %v884, 1.442695
    %v938 = vpow.pop %v937
    %v939 = vmul.f32 %v885, 1.442695
    %v940 = vpow.pop %v939
    %v941 = vmul.f32 %v886, 1.442695
    %v942 = vpow.pop %v941
    %v943 = vmul.f32 %v887, 1.442695
    %v944 = vpow.pop %v943
    %v945 = vmul.f32 %v888, 1.442695
    %v946 = vpow.pop %v945
    %v947 = vmul.f32 %v889, 1.442695
    %v948 = vpow.pop %v947
    %v949 = vmul.f32 %v890, 1.442695
    %v950 = vpow.pop %v949
    %v951 = vmul.f32 %v891, 1.442695
    %v952 = vpow.pop %v951
    %v953 = vmul.f32 %v892, 1.442695
    %v954 = vpow.pop %v953
    %v955 = vmul.f32 %v893, 1.442695
    %v956 = vpow.pop %v955
    %v957 = vmul.f32 %v894, 1.442695
    %v958 = vpow.pop %v957
    %991 = vrot.lane.b32.xlu0 %v831, 1
    %v992 = vpop.permute.xlu0 %991
    %993 = vrot.lane.b32.xlu0 %v832, 1
    %v994 = vpop.permute.xlu0 %993
    %995 = vrot.lane.b32.xlu0 %v833, 1
    %v996 = vpop.permute.xlu0 %995
    %997 = vrot.lane.b32.xlu0 %v834, 1
    %v998 = vpop.permute.xlu0 %997
    %999 = vrot.lane.b32.xlu0 %v835, 1
    %v1000 = vpop.permute.xlu0 %999
    %1001 = vrot.lane.b32.xlu0 %v836, 1
    %v1002 = vpop.permute.xlu0 %1001
    %1003 = vrot.lane.b32.xlu0 %v837, 1
    %v1004 = vpop.permute.xlu0 %1003
    %1005 = vrot.lane.b32.xlu0 %v838, 1
    %v1006 = vpop.permute.xlu0 %1005
    %1007 = vrot.lane.b32.xlu0 %v839, 1
    %v1008 = vpop.permute.xlu0 %1007
    %1009 = vrot.lane.b32.xlu0 %v840, 1
    %v1010 = vpop.permute.xlu0 %1009
    %1011 = vrot.lane.b32.xlu0 %v841, 1
    %v1012 = vpop.permute.xlu0 %1011
    %1013 = vrot.lane.b32.xlu0 %v842, 1
    %v1014 = vpop.permute.xlu0 %1013
    %1015 = vrot.lane.b32.xlu0 %v843, 1
    %v1016 = vpop.permute.xlu0 %1015
    %1017 = vrot.lane.b32.xlu0 %v844, 1
    %v1018 = vpop.permute.xlu0 %1017
    %1019 = vrot.lane.b32.xlu0 %v845, 1
    %v1020 = vpop.permute.xlu0 %1019
    %1021 = vrot.lane.b32.xlu0 %v846, 1
    %v1022 = vpop.permute.xlu0 %1021
    %1023 = vrot.lane.b32.xlu0 %v847, 1
    %v1024 = vpop.permute.xlu0 %1023
    %1025 = vrot.lane.b32.xlu0 %v848, 1
    %v1026 = vpop.permute.xlu0 %1025
    %1027 = vrot.lane.b32.xlu0 %v849, 1
    %v1028 = vpop.permute.xlu0 %1027
    %1029 = vrot.lane.b32.xlu0 %v850, 1
    %v1030 = vpop.permute.xlu0 %1029
    %1031 = vrot.lane.b32.xlu0 %v851, 1
    %v1032 = vpop.permute.xlu0 %1031
    %1033 = vrot.lane.b32.xlu0 %v852, 1
    %v1034 = vpop.permute.xlu0 %1033
    %1035 = vrot.lane.b32.xlu0 %v853, 1
    %v1036 = vpop.permute.xlu0 %1035
    %1037 = vrot.lane.b32.xlu0 %v854, 1
    %v1038 = vpop.permute.xlu0 %1037
    %1039 = vrot.lane.b32.xlu0 %v855, 1
    %v1040 = vpop.permute.xlu0 %1039
    %1041 = vrot.lane.b32.xlu0 %v856, 1
    %v1042 = vpop.permute.xlu0 %1041
    %1043 = vrot.lane.b32.xlu0 %v857, 1
    %v1044 = vpop.permute.xlu0 %1043
    %1045 = vrot.lane.b32.xlu0 %v858, 1
    %v1046 = vpop.permute.xlu0 %1045
    %1047 = vrot.lane.b32.xlu0 %v859, 1
    %v1048 = vpop.permute.xlu0 %1047
    %1049 = vrot.lane.b32.xlu0 %v860, 1
    %v1050 = vpop.permute.xlu0 %1049
    %1051 = vrot.lane.b32.xlu0 %v861, 1
    %v1052 = vpop.permute.xlu0 %1051
    %1053 = vrot.lane.b32.xlu0 %v862, 1
    %v1054 = vpop.permute.xlu0 %1053
    %v1087 = vsub.f32 %v545, %v992
    %v1088 = vsub.f32 %v548, %v994
    %v1089 = vsub.f32 %v553, %v996
    %v1090 = vsub.f32 %v556, %v998
    %v1091 = vsub.f32 %v561, %v1000
    %v1092 = vsub.f32 %v564, %v1002
    %v1093 = vsub.f32 %v569, %v1004
    %v1094 = vsub.f32 %v572, %v1006
    %v1095 = vsub.f32 %v577, %v1008
    %v1096 = vsub.f32 %v580, %v1010
    %v1097 = vsub.f32 %v585, %v1012
    %v1098 = vsub.f32 %v588, %v1014
    %v1099 = vsub.f32 %v593, %v1016
    %v1100 = vsub.f32 %v596, %v1018
    %v1101 = vsub.f32 %v601, %v1020
    %v1102 = vsub.f32 %v604, %v1022
    %v1103 = vsub.f32 %v609, %v1024
    %v1104 = vsub.f32 %v612, %v1026
    %v1105 = vsub.f32 %v617, %v1028
    %v1106 = vsub.f32 %v620, %v1030
    %v1107 = vsub.f32 %v625, %v1032
    %v1108 = vsub.f32 %v628, %v1034
    %v1109 = vsub.f32 %v633, %v1036
    %v1110 = vsub.f32 %v636, %v1038
    %v1111 = vsub.f32 %v641, %v1040
    %v1112 = vsub.f32 %v644, %v1042
    %v1113 = vsub.f32 %v649, %v1044
    %v1114 = vsub.f32 %v652, %v1046
    %v1115 = vsub.f32 %v657, %v1048
    %v1116 = vsub.f32 %v660, %v1050
    %v1117 = vsub.f32 %v665, %v1052
    %v1118 = vsub.f32 %v668, %v1054
    %v1119 = vmul.f32 %v1087, 1.442695
    %v1120 = vpow.pop %v1119
    %v1121 = vmul.f32 %v1088, 1.442695
    %v1122 = vpow.pop %v1121
    %v1123 = vmul.f32 %v1089, 1.442695
    %v1124 = vpow.pop %v1123
    %v1125 = vmul.f32 %v1090, 1.442695
    %v1126 = vpow.pop %v1125
    %v1127 = vmul.f32 %v1091, 1.442695
    %v1128 = vpow.pop %v1127
    %v1129 = vmul.f32 %v1092, 1.442695
    %v1130 = vpow.pop %v1129
    %v1131 = vmul.f32 %v1093, 1.442695
    %v1132 = vpow.pop %v1131
    %v1133 = vmul.f32 %v1094, 1.442695
    %v1134 = vpow.pop %v1133
    %v1135 = vmul.f32 %v1095, 1.442695
    %v1136 = vpow.pop %v1135
    %v1137 = vmul.f32 %v1096, 1.442695
    %v1138 = vpow.pop %v1137
    %v1139 = vmul.f32 %v1097, 1.442695
    %v1140 = vpow.pop %v1139
    %v1141 = vmul.f32 %v1098, 1.442695
    %v1142 = vpow.pop %v1141
    %v1143 = vmul.f32 %v1099, 1.442695
    %v1144 = vpow.pop %v1143
    %v1145 = vmul.f32 %v1100, 1.442695
    %v1146 = vpow.pop %v1145
    %v1147 = vmul.f32 %v1101, 1.442695
    %v1148 = vpow.pop %v1147
    %v1149 = vmul.f32 %v1102, 1.442695
    %v1150 = vpow.pop %v1149
    %v1151 = vmul.f32 %v1103, 1.442695
    %v1152 = vpow.pop %v1151
    %v1153 = vmul.f32 %v1104, 1.442695
    %v1154 = vpow.pop %v1153
    %v1155 = vmul.f32 %v1105, 1.442695
    %v1156 = vpow.pop %v1155
    %v1157 = vmul.f32 %v1106, 1.442695
    %v1158 = vpow.pop %v1157
    %v1159 = vmul.f32 %v1107, 1.442695
    %v1160 = vpow.pop %v1159
    %v1161 = vmul.f32 %v1108, 1.442695
    %v1162 = vpow.pop %v1161
    %v1163 = vmul.f32 %v1109, 1.442695
    %v1164 = vpow.pop %v1163
    %v1165 = vmul.f32 %v1110, 1.442695
    %v1166 = vpow.pop %v1165
    %v1167 = vmul.f32 %v1111, 1.442695
    %v1168 = vpow.pop %v1167
    %v1169 = vmul.f32 %v1112, 1.442695
    %v1170 = vpow.pop %v1169
    %v1171 = vmul.f32 %v1113, 1.442695
    %v1172 = vpow.pop %v1171
    %v1173 = vmul.f32 %v1114, 1.442695
    %v1174 = vpow.pop %v1173
    %v1175 = vmul.f32 %v1115, 1.442695
    %v1176 = vpow.pop %v1175
    %v1177 = vmul.f32 %v1116, 1.442695
    %v1178 = vpow.pop %v1177
    %v1179 = vmul.f32 %v1117, 1.442695
    %v1180 = vpow.pop %v1179
    %v1181 = vmul.f32 %v1118, 1.442695
    %v1182 = vpow.pop %v1181
    %1215 = vrot.lane.b32.xlu0 %v1120, 127
    %v1216 = vpop.permute.xlu0 %1215
    %1217 = vrot.lane.b32.xlu0 %v1122, 127
    %v1218 = vpop.permute.xlu0 %1217
    %1219 = vrot.lane.b32.xlu0 %v1124, 127
    %v1220 = vpop.permute.xlu0 %1219
    %1221 = vrot.lane.b32.xlu0 %v1126, 127
    %v1222 = vpop.permute.xlu0 %1221
    %1223 = vrot.lane.b32.xlu0 %v1128, 127
    %v1224 = vpop.permute.xlu0 %1223
    %1225 = vrot.lane.b32.xlu0 %v1130, 127
    %v1226 = vpop.permute.xlu0 %1225
    %1227 = vrot.lane.b32.xlu0 %v1132, 127
    %v1228 = vpop.permute.xlu0 %1227
    %1229 = vrot.lane.b32.xlu0 %v1134, 127
    %v1230 = vpop.permute.xlu0 %1229
    %1231 = vrot.lane.b32.xlu0 %v1136, 127
    %v1232 = vpop.permute.xlu0 %1231
    %1233 = vrot.lane.b32.xlu0 %v1138, 127
    %v1234 = vpop.permute.xlu0 %1233
    %1235 = vrot.lane.b32.xlu0 %v1140, 127
    %v1236 = vpop.permute.xlu0 %1235
    %1237 = vrot.lane.b32.xlu0 %v1142, 127
    %v1238 = vpop.permute.xlu0 %1237
    %1239 = vrot.lane.b32.xlu0 %v1144, 127
    %v1240 = vpop.permute.xlu0 %1239
    %1241 = vrot.lane.b32.xlu0 %v1146, 127
    %v1242 = vpop.permute.xlu0 %1241
    %1243 = vrot.lane.b32.xlu0 %v1148, 127
    %v1244 = vpop.permute.xlu0 %1243
    %1245 = vrot.lane.b32.xlu0 %v1150, 127
    %v1246 = vpop.permute.xlu0 %1245
    %1247 = vrot.lane.b32.xlu0 %v1152, 127
    %v1248 = vpop.permute.xlu0 %1247
    %1249 = vrot.lane.b32.xlu0 %v1154, 127
    %v1250 = vpop.permute.xlu0 %1249
    %1251 = vrot.lane.b32.xlu0 %v1156, 127
    %v1252 = vpop.permute.xlu0 %1251
    %1253 = vrot.lane.b32.xlu0 %v1158, 127
    %v1254 = vpop.permute.xlu0 %1253
    %1255 = vrot.lane.b32.xlu0 %v1160, 127
    %v1256 = vpop.permute.xlu0 %1255
    %1257 = vrot.lane.b32.xlu0 %v1162, 127
    %v1258 = vpop.permute.xlu0 %1257
    %1259 = vrot.lane.b32.xlu0 %v1164, 127
    %v1260 = vpop.permute.xlu0 %1259
    %1261 = vrot.lane.b32.xlu0 %v1166, 127
    %v1262 = vpop.permute.xlu0 %1261
    %1263 = vrot.lane.b32.xlu0 %v1168, 127
    %v1264 = vpop.permute.xlu0 %1263
    %1265 = vrot.lane.b32.xlu0 %v1170, 127
    %v1266 = vpop.permute.xlu0 %1265
    %1267 = vrot.lane.b32.xlu0 %v1172, 127
    %v1268 = vpop.permute.xlu0 %1267
    %1269 = vrot.lane.b32.xlu0 %v1174, 127
    %v1270 = vpop.permute.xlu0 %1269
    %1271 = vrot.lane.b32.xlu0 %v1176, 127
    %v1272 = vpop.permute.xlu0 %1271
    %1273 = vrot.lane.b32.xlu0 %v1178, 127
    %v1274 = vpop.permute.xlu0 %1273
    %1275 = vrot.lane.b32.xlu0 %v1180, 127
    %v1276 = vpop.permute.xlu0 %1275
    %1277 = vrot.lane.b32.xlu0 %v1182, 127
    %v1278 = vpop.permute.xlu0 %1277
    %v1311 = vadd.f32 %v896, %v1216
    %v1312 = vadd.f32 %v898, %v1218
    %v1313 = vadd.f32 %v900, %v1220
    %v1314 = vadd.f32 %v902, %v1222
    %v1315 = vadd.f32 %v904, %v1224
    %v1316 = vadd.f32 %v906, %v1226
    %v1317 = vadd.f32 %v908, %v1228
    %v1318 = vadd.f32 %v910, %v1230
    %v1319 = vadd.f32 %v912, %v1232
    %v1320 = vadd.f32 %v914, %v1234
    %v1321 = vadd.f32 %v916, %v1236
    %v1322 = vadd.f32 %v918, %v1238
    %v1323 = vadd.f32 %v920, %v1240
    %v1324 = vadd.f32 %v922, %v1242
    %v1325 = vadd.f32 %v924, %v1244
    %v1326 = vadd.f32 %v926, %v1246
    %v1327 = vadd.f32 %v928, %v1248
    %v1328 = vadd.f32 %v930, %v1250
    %v1329 = vadd.f32 %v932, %v1252
    %v1330 = vadd.f32 %v934, %v1254
    %v1331 = vadd.f32 %v936, %v1256
    %v1332 = vadd.f32 %v938, %v1258
    %v1333 = vadd.f32 %v940, %v1260
    %v1334 = vadd.f32 %v942, %v1262
    %v1335 = vadd.f32 %v944, %v1264
    %v1336 = vadd.f32 %v946, %v1266
    %v1337 = vadd.f32 %v948, %v1268
    %v1338 = vadd.f32 %v950, %v1270
    %v1339 = vadd.f32 %v952, %v1272
    %v1340 = vadd.f32 %v954, %v1274
    %v1341 = vadd.f32 %v956, %v1276
    %v1342 = vadd.f32 %v958, %v1278
    %v1343 = vlog2.pop %v1311
    %v1344 = vmul.f32 %v1343, 0.6931472
    %v1345 = vlog2.pop %v1312
    %v1346 = vmul.f32 %v1345, 0.6931472
    %v1347 = vlog2.pop %v1313
    %v1348 = vmul.f32 %v1347, 0.6931472
    %v1349 = vlog2.pop %v1314
    %v1350 = vmul.f32 %v1349, 0.6931472
    %v1351 = vlog2.pop %v1315
    %v1352 = vmul.f32 %v1351, 0.6931472
    %v1353 = vlog2.pop %v1316
    %v1354 = vmul.f32 %v1353, 0.6931472
    %v1355 = vlog2.pop %v1317
    %v1356 = vmul.f32 %v1355, 0.6931472
    %v1357 = vlog2.pop %v1318
    %v1358 = vmul.f32 %v1357, 0.6931472
    %v1359 = vlog2.pop %v1319
    %v1360 = vmul.f32 %v1359, 0.6931472
    %v1361 = vlog2.pop %v1320
    %v1362 = vmul.f32 %v1361, 0.6931472
    %v1363 = vlog2.pop %v1321
    %v1364 = vmul.f32 %v1363, 0.6931472
    %v1365 = vlog2.pop %v1322
    %v1366 = vmul.f32 %v1365, 0.6931472
    %v1367 = vlog2.pop %v1323
    %v1368 = vmul.f32 %v1367, 0.6931472
    %v1369 = vlog2.pop %v1324
    %v1370 = vmul.f32 %v1369, 0.6931472
    %v1371 = vlog2.pop %v1325
    %v1372 = vmul.f32 %v1371, 0.6931472
    %v1373 = vlog2.pop %v1326
    %v1374 = vmul.f32 %v1373, 0.6931472
    %v1375 = vlog2.pop %v1327
    %v1376 = vmul.f32 %v1375, 0.6931472
    %v1377 = vlog2.pop %v1328
    %v1378 = vmul.f32 %v1377, 0.6931472
    %v1379 = vlog2.pop %v1329
    %v1380 = vmul.f32 %v1379, 0.6931472
    %v1381 = vlog2.pop %v1330
    %v1382 = vmul.f32 %v1381, 0.6931472
    %v1383 = vlog2.pop %v1331
    %v1384 = vmul.f32 %v1383, 0.6931472
    %v1385 = vlog2.pop %v1332
    %v1386 = vmul.f32 %v1385, 0.6931472
    %v1387 = vlog2.pop %v1333
    %v1388 = vmul.f32 %v1387, 0.6931472
    %v1389 = vlog2.pop %v1334
    %v1390 = vmul.f32 %v1389, 0.6931472
    %v1391 = vlog2.pop %v1335
    %v1392 = vmul.f32 %v1391, 0.6931472
    %v1393 = vlog2.pop %v1336
    %v1394 = vmul.f32 %v1393, 0.6931472
    %v1395 = vlog2.pop %v1337
    %v1396 = vmul.f32 %v1395, 0.6931472
    %v1397 = vlog2.pop %v1338
    %v1398 = vmul.f32 %v1397, 0.6931472
    %v1399 = vlog2.pop %v1339
    %v1400 = vmul.f32 %v1399, 0.6931472
    %v1401 = vlog2.pop %v1340
    %v1402 = vmul.f32 %v1401, 0.6931472
    %v1403 = vlog2.pop %v1341
    %v1404 = vmul.f32 %v1403, 0.6931472
    %v1405 = vlog2.pop %v1342
    %v1406 = vmul.f32 %v1405, 0.6931472
    %v1407 = vadd.f32 %v831, %v1344
    %v1408 = vadd.f32 %v832, %v1346
    %v1409 = vadd.f32 %v833, %v1348
    %v1410 = vadd.f32 %v834, %v1350
    %v1411 = vadd.f32 %v835, %v1352
    %v1412 = vadd.f32 %v836, %v1354
    %v1413 = vadd.f32 %v837, %v1356
    %v1414 = vadd.f32 %v838, %v1358
    %v1415 = vadd.f32 %v839, %v1360
    %v1416 = vadd.f32 %v840, %v1362
    %v1417 = vadd.f32 %v841, %v1364
    %v1418 = vadd.f32 %v842, %v1366
    %v1419 = vadd.f32 %v843, %v1368
    %v1420 = vadd.f32 %v844, %v1370
    %v1421 = vadd.f32 %v845, %v1372
    %v1422 = vadd.f32 %v846, %v1374
    %v1423 = vadd.f32 %v847, %v1376
    %v1424 = vadd.f32 %v848, %v1378
    %v1425 = vadd.f32 %v849, %v1380
    %v1426 = vadd.f32 %v850, %v1382
    %v1427 = vadd.f32 %v851, %v1384
    %v1428 = vadd.f32 %v852, %v1386
    %v1429 = vadd.f32 %v853, %v1388
    %v1430 = vadd.f32 %v854, %v1390
    %v1431 = vadd.f32 %v855, %v1392
    %v1432 = vadd.f32 %v856, %v1394
    %v1433 = vadd.f32 %v857, %v1396
    %v1434 = vadd.f32 %v858, %v1398
    %v1435 = vadd.f32 %v859, %v1400
    %v1436 = vadd.f32 %v860, %v1402
    %v1437 = vadd.f32 %v861, %v1404
    %v1438 = vadd.f32 %v862, %v1406
    %v1439 = vld [vmem:[%s1] sm:$0xff]
    %v1440 = vld [vmem:[%s1 + $0x8] sm:$0xff]
    %v1441 = vld [vmem:[%s1 + $0x10] sm:$0xff]
    %v1442 = vld [vmem:[%s1 + $0x18] sm:$0xff]
    %v1443 = vld [vmem:[%s1 + $0x20] sm:$0xff]
    %v1444 = vld [vmem:[%s1 + $0x28] sm:$0xff]
    %v1445 = vld [vmem:[%s1 + $0x30] sm:$0xff]
    %v1446 = vld [vmem:[%s1 + $0x38] sm:$0xff]
    %v1447 = vld [vmem:[%s1 + $0x40] sm:$0xff]
    %v1448 = vld [vmem:[%s1 + $0x48] sm:$0xff]
    %v1449 = vld [vmem:[%s1 + $0x50] sm:$0xff]
    %v1450 = vld [vmem:[%s1 + $0x58] sm:$0xff]
    %v1451 = vld [vmem:[%s1 + $0x60] sm:$0xff]
    %v1452 = vld [vmem:[%s1 + $0x68] sm:$0xff]
    %v1453 = vld [vmem:[%s1 + $0x70] sm:$0xff]
    %v1454 = vld [vmem:[%s1 + $0x78] sm:$0xff]
    %v1455 = vld [vmem:[%s1 + $0x80] sm:$0xff]
    %v1456 = vld [vmem:[%s1 + $0x88] sm:$0xff]
    %v1457 = vld [vmem:[%s1 + $0x90] sm:$0xff]
    %v1458 = vld [vmem:[%s1 + $0x98] sm:$0xff]
    %v1459 = vld [vmem:[%s1 + $0xa0] sm:$0xff]
    %v1460 = vld [vmem:[%s1 + $0xa8] sm:$0xff]
    %v1461 = vld [vmem:[%s1 + $0xb0] sm:$0xff]
    %v1462 = vld [vmem:[%s1 + $0xb8] sm:$0xff]
    %v1463 = vld [vmem:[%s1 + $0xc0] sm:$0xff]
    %v1464 = vld [vmem:[%s1 + $0xc8] sm:$0xff]
    %v1465 = vld [vmem:[%s1 + $0xd0] sm:$0xff]
    %v1466 = vld [vmem:[%s1 + $0xd8] sm:$0xff]
    %v1467 = vld [vmem:[%s1 + $0xe0] sm:$0xff]
    %v1468 = vld [vmem:[%s1 + $0xe8] sm:$0xff]
    %v1469 = vld [vmem:[%s1 + $0xf0] sm:$0xff]
    %v1470 = vld [vmem:[%s1 + $0xf8] sm:$0xff]
    %vm1471 = vcmp.eq.s32.totalorder %v1439, 0
    %vm1472 = vcmp.eq.s32.totalorder %v1440, 0
    %vm1473 = vcmp.eq.s32.totalorder %v1441, 0
    %vm1474 = vcmp.eq.s32.totalorder %v1442, 0
    %vm1475 = vcmp.eq.s32.totalorder %v1443, 0
    %vm1476 = vcmp.eq.s32.totalorder %v1444, 0
    %vm1477 = vcmp.eq.s32.totalorder %v1445, 0
    %vm1478 = vcmp.eq.s32.totalorder %v1446, 0
    %vm1479 = vcmp.eq.s32.totalorder %v1447, 0
    %vm1480 = vcmp.eq.s32.totalorder %v1448, 0
    %vm1481 = vcmp.eq.s32.totalorder %v1449, 0
    %vm1482 = vcmp.eq.s32.totalorder %v1450, 0
    %vm1483 = vcmp.eq.s32.totalorder %v1451, 0
    %vm1484 = vcmp.eq.s32.totalorder %v1452, 0
    %vm1485 = vcmp.eq.s32.totalorder %v1453, 0
    %vm1486 = vcmp.eq.s32.totalorder %v1454, 0
    %vm1487 = vcmp.eq.s32.totalorder %v1455, 0
    %vm1488 = vcmp.eq.s32.totalorder %v1456, 0
    %vm1489 = vcmp.eq.s32.totalorder %v1457, 0
    %vm1490 = vcmp.eq.s32.totalorder %v1458, 0
    %vm1491 = vcmp.eq.s32.totalorder %v1459, 0
    %vm1492 = vcmp.eq.s32.totalorder %v1460, 0
    %vm1493 = vcmp.eq.s32.totalorder %v1461, 0
    %vm1494 = vcmp.eq.s32.totalorder %v1462, 0
    %vm1495 = vcmp.eq.s32.totalorder %v1463, 0
    %vm1496 = vcmp.eq.s32.totalorder %v1464, 0
    %vm1497 = vcmp.eq.s32.totalorder %v1465, 0
    %vm1498 = vcmp.eq.s32.totalorder %v1466, 0
    %vm1499 = vcmp.eq.s32.totalorder %v1467, 0
    %vm1500 = vcmp.eq.s32.totalorder %v1468, 0
    %vm1501 = vcmp.eq.s32.totalorder %v1469, 0
    %vm1502 = vcmp.eq.s32.totalorder %v1470, 0
    %v1503 = vsel %vm1471, %v545, %v736
    %v1504 = vsel %vm1472, %v548, %v738
    %v1505 = vsel %vm1473, %v553, %v740
    %v1506 = vsel %vm1474, %v556, %v742
    %v1507 = vsel %vm1475, %v561, %v744
    %v1508 = vsel %vm1476, %v564, %v746
    %v1509 = vsel %vm1477, %v569, %v748
    %v1510 = vsel %vm1478, %v572, %v750
    %v1511 = vsel %vm1479, %v577, %v752
    %v1512 = vsel %vm1480, %v580, %v754
    %v1513 = vsel %vm1481, %v585, %v756
    %v1514 = vsel %vm1482, %v588, %v758
    %v1515 = vsel %vm1483, %v593, %v760
    %v1516 = vsel %vm1484, %v596, %v762
    %v1517 = vsel %vm1485, %v601, %v764
    %v1518 = vsel %vm1486, %v604, %v766
    %v1519 = vsel %vm1487, %v609, %v768
    %v1520 = vsel %vm1488, %v612, %v770
    %v1521 = vsel %vm1489, %v617, %v772
    %v1522 = vsel %vm1490, %v620, %v774
    %v1523 = vsel %vm1491, %v625, %v776
    %v1524 = vsel %vm1492, %v628, %v778
    %v1525 = vsel %vm1493, %v633, %v780
    %v1526 = vsel %vm1494, %v636, %v782
    %v1527 = vsel %vm1495, %v641, %v784
    %v1528 = vsel %vm1496, %v644, %v786
    %v1529 = vsel %vm1497, %v649, %v788
    %v1530 = vsel %vm1498, %v652, %v790
    %v1531 = vsel %vm1499, %v657, %v792
    %v1532 = vsel %vm1500, %v660, %v794
    %v1533 = vsel %vm1501, %v665, %v796
    %v1534 = vsel %vm1502, %v668, %v798
    %s1535 = sld [smem:[#allocation2]]
    %s1536 = sld [smem:[#allocation2 + $0x1]]
    %v1537 = vstv %s1535
    %v1538 = vstv %s1536
    %v1539 = vsel %vm1471, %v1537, %v1538
    %v1540 = vsel %vm1472, %v1537, %v1538
    %v1541 = vsel %vm1473, %v1537, %v1538
    %v1542 = vsel %vm1474, %v1537, %v1538
    %v1543 = vsel %vm1475, %v1537, %v1538
    %v1544 = vsel %vm1476, %v1537, %v1538
    %v1545 = vsel %vm1477, %v1537, %v1538
    %v1546 = vsel %vm1478, %v1537, %v1538
    %v1547 = vsel %vm1479, %v1537, %v1538
    %v1548 = vsel %vm1480, %v1537, %v1538
    %v1549 = vsel %vm1481, %v1537, %v1538
    %v1550 = vsel %vm1482, %v1537, %v1538
    %v1551 = vsel %vm1483, %v1537, %v1538
    %v1552 = vsel %vm1484, %v1537, %v1538
    %v1553 = vsel %vm1485, %v1537, %v1538
    %v1554 = vsel %vm1486, %v1537, %v1538
    %v1555 = vsel %vm1487, %v1537, %v1538
    %v1556 = vsel %vm1488, %v1537, %v1538
    %v1557 = vsel %vm1489, %v1537, %v1538
    %v1558 = vsel %vm1490, %v1537, %v1538
    %v1559 = vsel %vm1491, %v1537, %v1538
    %v1560 = vsel %vm1492, %v1537, %v1538
    %v1561 = vsel %vm1493, %v1537, %v1538
    %v1562 = vsel %vm1494, %v1537, %v1538
    %v1563 = vsel %vm1495, %v1537, %v1538
    %v1564 = vsel %vm1496, %v1537, %v1538
    %v1565 = vsel %vm1497, %v1537, %v1538
    %v1566 = vsel %vm1498, %v1537, %v1538
    %v1567 = vsel %vm1499, %v1537, %v1538
    %v1568 = vsel %vm1500, %v1537, %v1538
    %v1569 = vsel %vm1501, %v1537, %v1538
    %v1570 = vsel %vm1502, %v1537, %v1538
    %v1571 = vld [vmem:[%s2] sm:$0xff]
    %v1572 = vld [vmem:[%s2 + $0x8] sm:$0xff]
    %v1573 = vld [vmem:[%s2 + $0x10] sm:$0xff]
    %v1574 = vld [vmem:[%s2 + $0x18] sm:$0xff]
    %v1575 = vld [vmem:[%s2 + $0x20] sm:$0xff]
    %v1576 = vld [vmem:[%s2 + $0x28] sm:$0xff]
    %v1577 = vld [vmem:[%s2 + $0x30] sm:$0xff]
    %v1578 = vld [vmem:[%s2 + $0x38] sm:$0xff]
    %v1579 = vld [vmem:[%s2 + $0x40] sm:$0xff]
    %v1580 = vld [vmem:[%s2 + $0x48] sm:$0xff]
    %v1581 = vld [vmem:[%s2 + $0x50] sm:$0xff]
    %v1582 = vld [vmem:[%s2 + $0x58] sm:$0xff]
    %v1583 = vld [vmem:[%s2 + $0x60] sm:$0xff]
    %v1584 = vld [vmem:[%s2 + $0x68] sm:$0xff]
    %v1585 = vld [vmem:[%s2 + $0x70] sm:$0xff]
    %v1586 = vld [vmem:[%s2 + $0x78] sm:$0xff]
    %v1587 = vld [vmem:[%s2 + $0x80] sm:$0xff]
    %v1588 = vld [vmem:[%s2 + $0x88] sm:$0xff]
    %v1589 = vld [vmem:[%s2 + $0x90] sm:$0xff]
    %v1590 = vld [vmem:[%s2 + $0x98] sm:$0xff]
    %v1591 = vld [vmem:[%s2 + $0xa0] sm:$0xff]
    %v1592 = vld [vmem:[%s2 + $0xa8] sm:$0xff]
    %v1593 = vld [vmem:[%s2 + $0xb0] sm:$0xff]
    %v1594 = vld [vmem:[%s2 + $0xb8] sm:$0xff]
    %v1595 = vld [vmem:[%s2 + $0xc0] sm:$0xff]
    %v1596 = vld [vmem:[%s2 + $0xc8] sm:$0xff]
    %v1597 = vld [vmem:[%s2 + $0xd0] sm:$0xff]
    %v1598 = vld [vmem:[%s2 + $0xd8] sm:$0xff]
    %v1599 = vld [vmem:[%s2 + $0xe0] sm:$0xff]
    %v1600 = vld [vmem:[%s2 + $0xe8] sm:$0xff]
    %v1601 = vld [vmem:[%s2 + $0xf0] sm:$0xff]
    %v1602 = vld [vmem:[%s2 + $0xf8] sm:$0xff]
    %v1603 = vmul.f32 %v1539, %v1571
    %v1604 = vmul.f32 %v1540, %v1572
    %v1605 = vmul.f32 %v1541, %v1573
    %v1606 = vmul.f32 %v1542, %v1574
    %v1607 = vmul.f32 %v1543, %v1575
    %v1608 = vmul.f32 %v1544, %v1576
    %v1609 = vmul.f32 %v1545, %v1577
    %v1610 = vmul.f32 %v1546, %v1578
    %v1611 = vmul.f32 %v1547, %v1579
    %v1612 = vmul.f32 %v1548, %v1580
    %v1613 = vmul.f32 %v1549, %v1581
    %v1614 = vmul.f32 %v1550, %v1582
    %v1615 = vmul.f32 %v1551, %v1583
    %v1616 = vmul.f32 %v1552, %v1584
    %v1617 = vmul.f32 %v1553, %v1585
    %v1618 = vmul.f32 %v1554, %v1586
    %v1619 = vmul.f32 %v1555, %v1587
    %v1620 = vmul.f32 %v1556, %v1588
    %v1621 = vmul.f32 %v1557, %v1589
    %v1622 = vmul.f32 %v1558, %v1590
    %v1623 = vmul.f32 %v1559, %v1591
    %v1624 = vmul.f32 %v1560, %v1592
    %v1625 = vmul.f32 %v1561, %v1593
    %v1626 = vmul.f32 %v1562, %v1594
    %v1627 = vmul.f32 %v1563, %v1595
    %v1628 = vmul.f32 %v1564, %v1596
    %v1629 = vmul.f32 %v1565, %v1597
    %v1630 = vmul.f32 %v1566, %v1598
    %v1631 = vmul.f32 %v1567, %v1599
    %v1632 = vmul.f32 %v1568, %v1600
    %v1633 = vmul.f32 %v1569, %v1601
    %v1634 = vmul.f32 %v1570, %v1602
    %v1635 = vsub.f32 %v1407, %v1503
    %v1636 = vsub.f32 %v1408, %v1504
    %v1637 = vsub.f32 %v1409, %v1505
    %v1638 = vsub.f32 %v1410, %v1506
    %v1639 = vsub.f32 %v1411, %v1507
    %v1640 = vsub.f32 %v1412, %v1508
    %v1641 = vsub.f32 %v1413, %v1509
    %v1642 = vsub.f32 %v1414, %v1510
    %v1643 = vsub.f32 %v1415, %v1511
    %v1644 = vsub.f32 %v1416, %v1512
    %v1645 = vsub.f32 %v1417, %v1513
    %v1646 = vsub.f32 %v1418, %v1514
    %v1647 = vsub.f32 %v1419, %v1515
    %v1648 = vsub.f32 %v1420, %v1516
    %v1649 = vsub.f32 %v1421, %v1517
    %v1650 = vsub.f32 %v1422, %v1518
    %v1651 = vsub.f32 %v1423, %v1519
    %v1652 = vsub.f32 %v1424, %v1520
    %v1653 = vsub.f32 %v1425, %v1521
    %v1654 = vsub.f32 %v1426, %v1522
    %v1655 = vsub.f32 %v1427, %v1523
    %v1656 = vsub.f32 %v1428, %v1524
    %v1657 = vsub.f32 %v1429, %v1525
    %v1658 = vsub.f32 %v1430, %v1526
    %v1659 = vsub.f32 %v1431, %v1527
    %v1660 = vsub.f32 %v1432, %v1528
    %v1661 = vsub.f32 %v1433, %v1529
    %v1662 = vsub.f32 %v1434, %v1530
    %v1663 = vsub.f32 %v1435, %v1531
    %v1664 = vsub.f32 %v1436, %v1532
    %v1665 = vsub.f32 %v1437, %v1533
    %v1666 = vsub.f32 %v1438, %v1534
    %v1667 = vmul.f32 %v1603, %v1635
    %v1668 = vmul.f32 %v1604, %v1636
    %v1669 = vmul.f32 %v1605, %v1637
    %v1670 = vmul.f32 %v1606, %v1638
    %v1671 = vmul.f32 %v1607, %v1639
    %v1672 = vmul.f32 %v1608, %v1640
    %v1673 = vmul.f32 %v1609, %v1641
    %v1674 = vmul.f32 %v1610, %v1642
    %v1675 = vmul.f32 %v1611, %v1643
    %v1676 = vmul.f32 %v1612, %v1644
    %v1677 = vmul.f32 %v1613, %v1645
    %v1678 = vmul.f32 %v1614, %v1646
    %v1679 = vmul.f32 %v1615, %v1647
    %v1680 = vmul.f32 %v1616, %v1648
    %v1681 = vmul.f32 %v1617, %v1649
    %v1682 = vmul.f32 %v1618, %v1650
    %v1683 = vmul.f32 %v1619, %v1651
    %v1684 = vmul.f32 %v1620, %v1652
    %v1685 = vmul.f32 %v1621, %v1653
    %v1686 = vmul.f32 %v1622, %v1654
    %v1687 = vmul.f32 %v1623, %v1655
    %v1688 = vmul.f32 %v1624, %v1656
    %v1689 = vmul.f32 %v1625, %v1657
    %v1690 = vmul.f32 %v1626, %v1658
    %v1691 = vmul.f32 %v1627, %v1659
    %v1692 = vmul.f32 %v1628, %v1660
    %v1693 = vmul.f32 %v1629, %v1661
    %v1694 = vmul.f32 %v1630, %v1662
    %v1695 = vmul.f32 %v1631, %v1663
    %v1696 = vmul.f32 %v1632, %v1664
    %v1697 = vmul.f32 %v1633, %v1665
    %v1698 = vmul.f32 %v1634, %v1666
    %1731 = vrot.lane.b32.xlu0 %v1603, 1
    %v1732 = vpop.permute.xlu0 %1731
    %1733 = vrot.lane.b32.xlu0 %v1604, 1
    %v1734 = vpop.permute.xlu0 %1733
    %1735 = vrot.lane.b32.xlu0 %v1605, 1
    %v1736 = vpop.permute.xlu0 %1735
    %1737 = vrot.lane.b32.xlu0 %v1606, 1
    %v1738 = vpop.permute.xlu0 %1737
    %1739 = vrot.lane.b32.xlu0 %v1607, 1
    %v1740 = vpop.permute.xlu0 %1739
    %1741 = vrot.lane.b32.xlu0 %v1608, 1
    %v1742 = vpop.permute.xlu0 %1741
    %1743 = vrot.lane.b32.xlu0 %v1609, 1
    %v1744 = vpop.permute.xlu0 %1743
    %1745 = vrot.lane.b32.xlu0 %v1610, 1
    %v1746 = vpop.permute.xlu0 %1745
    %1747 = vrot.lane.b32.xlu0 %v1611, 1
    %v1748 = vpop.permute.xlu0 %1747
    %1749 = vrot.lane.b32.xlu0 %v1612, 1
    %v1750 = vpop.permute.xlu0 %1749
    %1751 = vrot.lane.b32.xlu0 %v1613, 1
    %v1752 = vpop.permute.xlu0 %1751
    %1753 = vrot.lane.b32.xlu0 %v1614, 1
    %v1754 = vpop.permute.xlu0 %1753
    %1755 = vrot.lane.b32.xlu0 %v1615, 1
    %v1756 = vpop.permute.xlu0 %1755
    %1757 = vrot.lane.b32.xlu0 %v1616, 1
    %v1758 = vpop.permute.xlu0 %1757
    %1759 = vrot.lane.b32.xlu0 %v1617, 1
    %v1760 = vpop.permute.xlu0 %1759
    %1761 = vrot.lane.b32.xlu0 %v1618, 1
    %v1762 = vpop.permute.xlu0 %1761
    %1763 = vrot.lane.b32.xlu0 %v1619, 1
    %v1764 = vpop.permute.xlu0 %1763
    %1765 = vrot.lane.b32.xlu0 %v1620, 1
    %v1766 = vpop.permute.xlu0 %1765
    %1767 = vrot.lane.b32.xlu0 %v1621, 1
    %v1768 = vpop.permute.xlu0 %1767
    %1769 = vrot.lane.b32.xlu0 %v1622, 1
    %v1770 = vpop.permute.xlu0 %1769
    %1771 = vrot.lane.b32.xlu0 %v1623, 1
    %v1772 = vpop.permute.xlu0 %1771
    %1773 = vrot.lane.b32.xlu0 %v1624, 1
    %v1774 = vpop.permute.xlu0 %1773
    %1775 = vrot.lane.b32.xlu0 %v1625, 1
    %v1776 = vpop.permute.xlu0 %1775
    %1777 = vrot.lane.b32.xlu0 %v1626, 1
    %v1778 = vpop.permute.xlu0 %1777
    %1779 = vrot.lane.b32.xlu0 %v1627, 1
    %v1780 = vpop.permute.xlu0 %1779
    %1781 = vrot.lane.b32.xlu0 %v1628, 1
    %v1782 = vpop.permute.xlu0 %1781
    %1783 = vrot.lane.b32.xlu0 %v1629, 1
    %v1784 = vpop.permute.xlu0 %1783
    %1785 = vrot.lane.b32.xlu0 %v1630, 1
    %v1786 = vpop.permute.xlu0 %1785
    %1787 = vrot.lane.b32.xlu0 %v1631, 1
    %v1788 = vpop.permute.xlu0 %1787
    %1789 = vrot.lane.b32.xlu0 %v1632, 1
    %v1790 = vpop.permute.xlu0 %1789
    %1791 = vrot.lane.b32.xlu0 %v1633, 1
    %v1792 = vpop.permute.xlu0 %1791
    %1793 = vrot.lane.b32.xlu0 %v1634, 1
    %v1794 = vpop.permute.xlu0 %1793
    %vm1827 = vcmask 7168
    %v1828 = vsel %vm1827, %v1667, %v1732
    %v1829 = vsel %vm1827, %v1668, %v1734
    %v1830 = vsel %vm1827, %v1669, %v1736
    %v1831 = vsel %vm1827, %v1670, %v1738
    %v1832 = vsel %vm1827, %v1671, %v1740
    %v1833 = vsel %vm1827, %v1672, %v1742
    %v1834 = vsel %vm1827, %v1673, %v1744
    %v1835 = vsel %vm1827, %v1674, %v1746
    %v1836 = vsel %vm1827, %v1675, %v1748
    %v1837 = vsel %vm1827, %v1676, %v1750
    %v1838 = vsel %vm1827, %v1677, %v1752
    %v1839 = vsel %vm1827, %v1678, %v1754
    %v1840 = vsel %vm1827, %v1679, %v1756
    %v1841 = vsel %vm1827, %v1680, %v1758
    %v1842 = vsel %vm1827, %v1681, %v1760
    %v1843 = vsel %vm1827, %v1682, %v1762
    %v1844 = vsel %vm1827, %v1683, %v1764
    %v1845 = vsel %vm1827, %v1684, %v1766
    %v1846 = vsel %vm1827, %v1685, %v1768
    %v1847 = vsel %vm1827, %v1686, %v1770
    %v1848 = vsel %vm1827, %v1687, %v1772
    %v1849 = vsel %vm1827, %v1688, %v1774
    %v1850 = vsel %vm1827, %v1689, %v1776
    %v1851 = vsel %vm1827, %v1690, %v1778
    %v1852 = vsel %vm1827, %v1691, %v1780
    %v1853 = vsel %vm1827, %v1692, %v1782
    %v1854 = vsel %vm1827, %v1693, %v1784
    %v1855 = vsel %vm1827, %v1694, %v1786
    %v1856 = vsel %vm1827, %v1695, %v1788
    %v1857 = vsel %vm1827, %v1696, %v1790
    %v1858 = vsel %vm1827, %v1697, %v1792
    %v1859 = vsel %vm1827, %v1698, %v1794
    %vm1860 = vcmask 15360
    %1861 = vst.msk [vmem:[%s9] sm:$0xff] %vm1860, %v1828
    %1862 = vst.msk [vmem:[%s9 + $0x8] sm:$0xff] %vm1860, %v1829
    %1863 = vst.msk [vmem:[%s9 + $0x10] sm:$0xff] %vm1860, %v1830
    %1864 = vst.msk [vmem:[%s9 + $0x18] sm:$0xff] %vm1860, %v1831
    %1865 = vst.msk [vmem:[%s9 + $0x20] sm:$0xff] %vm1860, %v1832
    %1866 = vst.msk [vmem:[%s9 + $0x28] sm:$0xff] %vm1860, %v1833
    %1867 = vst.msk [vmem:[%s9 + $0x30] sm:$0xff] %vm1860, %v1834
    %1868 = vst.msk [vmem:[%s9 + $0x38] sm:$0xff] %vm1860, %v1835
    %1869 = vst.msk [vmem:[%s9 + $0x40] sm:$0xff] %vm1860, %v1836
    %1870 = vst.msk [vmem:[%s9 + $0x48] sm:$0xff] %vm1860, %v1837
    %1871 = vst.msk [vmem:[%s9 + $0x50] sm:$0xff] %vm1860, %v1838
    %1872 = vst.msk [vmem:[%s9 + $0x58] sm:$0xff] %vm1860, %v1839
    %1873 = vst.msk [vmem:[%s9 + $0x60] sm:$0xff] %vm1860, %v1840
    %1874 = vst.msk [vmem:[%s9 + $0x68] sm:$0xff] %vm1860, %v1841
    %1875 = vst.msk [vmem:[%s9 + $0x70] sm:$0xff] %vm1860, %v1842
    %1876 = vst.msk [vmem:[%s9 + $0x78] sm:$0xff] %vm1860, %v1843
    %1877 = vst.msk [vmem:[%s9 + $0x80] sm:$0xff] %vm1860, %v1844
    %1878 = vst.msk [vmem:[%s9 + $0x88] sm:$0xff] %vm1860, %v1845
    %1879 = vst.msk [vmem:[%s9 + $0x90] sm:$0xff] %vm1860, %v1846
    %1880 = vst.msk [vmem:[%s9 + $0x98] sm:$0xff] %vm1860, %v1847
    %1881 = vst.msk [vmem:[%s9 + $0xa0] sm:$0xff] %vm1860, %v1848
    %1882 = vst.msk [vmem:[%s9 + $0xa8] sm:$0xff] %vm1860, %v1849
    %1883 = vst.msk [vmem:[%s9 + $0xb0] sm:$0xff] %vm1860, %v1850
    %1884 = vst.msk [vmem:[%s9 + $0xb8] sm:$0xff] %vm1860, %v1851
    %1885 = vst.msk [vmem:[%s9 + $0xc0] sm:$0xff] %vm1860, %v1852
    %1886 = vst.msk [vmem:[%s9 + $0xc8] sm:$0xff] %vm1860, %v1853
    %1887 = vst.msk [vmem:[%s9 + $0xd0] sm:$0xff] %vm1860, %v1854
    %1888 = vst.msk [vmem:[%s9 + $0xd8] sm:$0xff] %vm1860, %v1855
    %1889 = vst.msk [vmem:[%s9 + $0xe0] sm:$0xff] %vm1860, %v1856
    %1890 = vst.msk [vmem:[%s9 + $0xe8] sm:$0xff] %vm1860, %v1857
    %1891 = vst.msk [vmem:[%s9 + $0xf0] sm:$0xff] %vm1860, %v1858
    %1892 = vst.msk [vmem:[%s9 + $0xf8] sm:$0xff] %vm1860, %v1859
    // Predicated region
    $region38: #{tpu_custom_call.1} parent=1 // pred_check
      _
    $region39: #{tpu_custom_call.1} parent=1 // pred_check_branch
      %1894 = sbr.rel (0) target = $region41
    $region40: #{tpu_custom_call.1} parent=1 // pred_region
      %s1896 = ssub.s32 4096, 4096
      %1897 = vsyncadd [#allocation3], %s1896
      %s1898 = sshll.u32 [#allocation5], 4
      %s1899 = int_to_ptr.vmem [resolvable:$true] %s1898
      %1904 = dma.vmem_to_hbm [thread:$0]  %s1899, 4096, %s8, [#allocation3], 128, 128, 8
    $region41: #{tpu_custom_call.1} parent=1 // pred_fallthru
      _
    // Predicated region
    $region42: #{tpu_custom_call.1} parent=1 // pred_check
      _
    $region43: #{tpu_custom_call.1} parent=1 // pred_check_branch
      %1906 = sbr.rel (0) target = $region45
    $region44: #{tpu_custom_call.1} parent=1 // pred_region
      _
    $region45: #{tpu_custom_call.1} parent=1 // pred_fallthru
      _
    // Predicated region
    $region46: #{tpu_custom_call.1} parent=1 // pred_check
      _
    $region47: #{tpu_custom_call.1} parent=1 // pred_check_branch
      %1908 = sbr.rel (0) target = $region49
    $region48: #{tpu_custom_call.1} parent=1 // pred_region
      %1909 = dma.done [#allocation3], 4096
    $region49: #{tpu_custom_call.1} parent=1 // pred_fallthru
      _
    // Predicated region
    $region50: #{tpu_custom_call.1} parent=1 // pred_check
      _
    $region51: #{tpu_custom_call.1} parent=1 // pred_check_branch
      %1911 = sbr.rel (0) target = $region53
    $region52: #{tpu_custom_call.1} parent=1 // pred_region
      _
    $region53: #{tpu_custom_call.1} parent=1 // pred_fallthru
      _
    %1912 = vsyncpa [#allocation3], 1
    %1913 = vsyncpa [#allocation4], 1

</llo_original>
